<compile_context>
chip_gen: v7x
topology: tpu7x:2x2x1
jax: 0.10.0
libtpu: 0.0.40
codegen_flags: <defaults>
</compile_context>

<pallas_src>
import functools
import math

import jax
import jax.numpy as jnp
from jax.experimental import pallas as pl
from jax.experimental.pallas import tpu as pltpu

_INV_SQRT2 = 0.7071067811865476
_LANE = 128
_SUBLANE = 8
_NORM_EPS_SQ = 1e-24      # F.normalize eps (1e-12), squared (we clamp sum of squares)
_GN_EPS = 1e-5            # GraphNorm eps


def _gelu(x):
    # exact (erf) GELU, matching torch.nn.GELU() default
    return 0.5 * x * (1.0 + jax.lax.erf(x * _INV_SQRT2))


def _row_l2norm(x):
    return jnp.sqrt(jnp.sum(x * x, axis=-1, keepdims=True))


def _l2_normalize_rows(h):
    # F.normalize(h, p=2, dim=-1) == h / max(||h||, eps); rsqrt -> EUP slot
    ss = jnp.sum(h * h, axis=-1, keepdims=True)
    return h * jax.lax.rsqrt(jnp.maximum(ss, _NORM_EPS_SQ))


# --------------------------------------------------------------------------
# Pass 1: GCNChain 1   f = GELU(MessageNorm(X, (A_hat @ X) @ W1 + b1))
#   aggregation:  dis_i * sum_j (A+I)[i,j] * (dis_j * X_j)   (int8 A, bf16 RHS)
# --------------------------------------------------------------------------
def _chain1_kernel(tk, resident, a_ref, xc_ref, xr_ref, dis_ref, w1_ref,
                   b1_ref, s1_ref, f_ref, fs_ref, acc_ref):
    k = pl.program_id(1)

    @pl.when(k == 0)
    def _init():
        acc_ref[...] = jnp.zeros_like(acc_ref)

    if resident:
        start = pl.multiple_of(k * tk, tk)
        xc = xc_ref[pl.ds(start, tk), :]           # slice of the VMEM-resident RHS
    else:
        xc = xc_ref[...]                           # k-tiled RHS block
    acc_ref[...] += jnp.dot(a_ref[...].astype(jnp.bfloat16), xc,
                            preferred_element_type=jnp.float32)

    @pl.when(k == pl.num_programs(1) - 1)
    def _finalize():
        dis = dis_ref[...]                                         # [TM, 1] f32
        z = acc_ref[...] * dis                                     # A_hat @ X rows
        h = jnp.dot(z, w1_ref[...], preferred_element_type=jnp.float32)
        h = h + b1_ref[...]
        msg = _l2_normalize_rows(h)
        f = _gelu(msg * _row_l2norm(xr_ref[...]) * s1_ref[0, 0])   # f32
        f_ref[...] = f.astype(f_ref.dtype)                         # for MessageNorm
        fs_ref[...] = (f * dis).astype(fs_ref.dtype)               # pre-scaled agg op


# --------------------------------------------------------------------------
# Pass 2: GCNChain 2 + residual, plus per-row-tile GraphNorm statistics
# --------------------------------------------------------------------------
def _chain2_kernel(tk, resident, a_ref, fc_ref, fr_ref, xr_ref, dis_ref,
                   w2_ref, b2_ref, s2_ref, y_ref, s1p_ref, s2p_ref, acc_ref):
    k = pl.program_id(1)

    @pl.when(k == 0)
    def _init():
        acc_ref[...] = jnp.zeros_like(acc_ref)

    if resident:
        start = pl.multiple_of(k * tk, tk)
        fc = fc_ref[pl.ds(start, tk), :]
    else:
        fc = fc_ref[...]
    acc_ref[...] += jnp.dot(a_ref[...].astype(jnp.bfloat16), fc,
                            preferred_element_type=jnp.float32)

    @pl.when(k == pl.num_programs(1) - 1)
    def _finalize():
        dis = dis_ref[...]
        z = acc_ref[...] * dis                                     # [TM, Hp] f32
        h2 = jnp.dot(z, w2_ref[...], preferred_element_type=jnp.float32)
        h2 = h2 + b2_ref[...]
        msg = _l2_normalize_rows(h2)
        fr = fr_ref[...].astype(jnp.float32)
        f2 = _gelu(msg * _row_l2norm(fr) * s2_ref[0, 0])
        y = f2 + xr_ref[...]                                       # residual
        y_ref[...] = y

        d_pad = y.shape[1]
        col_sum = jnp.sum(y, axis=0, keepdims=True)                # [1, Dp]
        col_sq = jnp.sum(y * y, axis=0, keepdims=True)             # [1, Dp]
        rows = jax.lax.broadcasted_iota(jnp.int32, (_SUBLANE, d_pad), 0)
        s1p_ref[...] = jnp.where(
            rows == 0, jnp.broadcast_to(col_sum, (_SUBLANE, d_pad)), 0.0)
        s2p_ref[...] = jnp.where(
            rows == 0, jnp.broadcast_to(col_sq, (_SUBLANE, d_pad)), 0.0)


# --------------------------------------------------------------------------
# Pass 3: GraphNorm normalize (+ GELU), per-column scale/offset precomputed
# --------------------------------------------------------------------------
def _graphnorm_kernel(y_ref, scale_ref, offset_ref, out_ref):
    out_ref[...] = _gelu(y_ref[...] * scale_ref[...] + offset_ref[...])


# --------------------------------------------------------------------------
# Wrapper glue
# --------------------------------------------------------------------------
def _round_up(v, m):
    return ((v + m - 1) // m) * m


def _choose_tiles(n):
    """Pick (n_pad, tm, tk).  N is padded up to a multiple of the row tile so
    we never fall off the 128x128 tile cliff; keep >=2 row tiles when the graph
    is big enough (v7x shards the 'parallel' axis over 2 TensorCores); the k
    tile is the largest (x128) divisor of n_pad up to 4096 to amortize the
    per-grid-step overhead."""
    n128 = _round_up(max(n, _LANE), _LANE)
    if n128 <= _LANE:
        tm = _LANE
    elif n128 <= 8 * _LANE:
        tm = _round_up(n128 // 2, _LANE)           # split into ~2 row tiles
    else:
        tm = 4 * _LANE                             # 512-row tiles for big graphs
    n_pad = _round_up(n128, tm)
    tk = _LANE
    for t in (2 * _LANE, 4 * _LANE, 8 * _LANE, 16 * _LANE, 32 * _LANE):
        if n_pad % t == 0:
            tk = t
    return n_pad, tm, tk


def _vmem_limit_bytes():
    # ~3/4 of physical VMEM, capped at 96 MiB (=> 48 MiB on v7x, 96 MiB v5e/v6e).
    try:
        cap = pltpu.get_tpu_info().vmem_capacity_bytes
    except Exception:
        cap = 64 * 1024 * 1024
    return int(min(96 * 1024 * 1024, (3 * cap) // 4))


def _pad2(x, rows, cols):
    r, c = x.shape
    return jnp.pad(x, ((0, rows - r), (0, cols - c)))


def prepare_graph(edge_index, num_nodes):
    """Build (A + I) as exact int8 counts and D^-1/2 once; pad to the tile grid.
    (Plain-JAX glue, executed once per graph, not per layer.)"""
    src, dst = edge_index[0], edge_index[1]
    a = jnp.zeros((num_nodes, num_nodes), jnp.float32).at[dst, src].add(1.0)
    a = a + jnp.eye(num_nodes, dtype=jnp.float32)        # add self loops
    deg = jnp.sum(a, axis=1)
    dis = jnp.where(deg > 0, 1.0 / jnp.sqrt(deg), 0.0)   # D^-1/2
    n_pad, tm, tk = _choose_tiles(num_nodes)
    a_i8 = _pad2(a, n_pad, n_pad).astype(jnp.int8)       # exact small-int counts
    dis_pad = jnp.pad(dis, (0, n_pad - num_nodes)).reshape(n_pad, 1)
    return {"a": a_i8, "dis": dis_pad, "n": int(num_nodes),
            "tm": int(tm), "tk": int(tk)}


def _gcnffn_padded(x_t, a_i8, dis_pad, params, *, n, tm, tk):
    n_pad = a_i8.shape[0]
    d = x_t.shape[1]
    h = params["w1"].shape[1]
    d_pad = _round_up(max(d, _LANE), _LANE)
    h_pad = _round_up(max(h, _LANE), _LANE)
    n_row_tiles = n_pad // tm
    grid = (n_row_tiles, n_pad // tk)

    x_f32 = _pad2(x_t, n_pad, d_pad)                          # residual / row norms
    x_agg = (dis_pad * x_f32).astype(jnp.bfloat16)            # pre-scaled agg RHS

    w1 = _pad2(params["w1"].astype(jnp.float32), d_pad, h_pad)
    b1 = _pad2(params["b1"].astype(jnp.float32), 1, h_pad)
    w2 = _pad2(params["w2"].astype(jnp.float32), h_pad, d_pad)
    b2 = _pad2(params["b2"].astype(jnp.float32), 1, d_pad)
    gw = _pad2(params["g_weight"].astype(jnp.float32), 1, d_pad)
    gb = _pad2(params["g_bias"].astype(jnp.float32), 1, d_pad)
    gm = _pad2(params["g_mean_scale"].astype(jnp.float32), 1, d_pad)
    s1 = params["s1"].astype(jnp.float32)
    s2 = params["s2"].astype(jnp.float32)

    vmem_limit = _vmem_limit_bytes()
    cparams = pltpu.CompilerParams(
        dimension_semantics=("parallel", "arbitrary"),
        vmem_limit_bytes=vmem_limit)
    smem = pl.BlockSpec(memory_space=pltpu.MemorySpace.SMEM)

    # Keep the aggregation RHS fully VMEM-resident (one HBM read total) unless
    # it would blow the budget; otherwise fall back to the k-tiled spec.
    resident = 4 * n_pad * max(d_pad, h_pad) <= vmem_limit // 3
    if resident:
        x_spec = pl.BlockSpec((n_pad, d_pad), lambda i, k: (0, 0))
        f_spec = pl.BlockSpec((n_pad, h_pad), lambda i, k: (0, 0))
    else:
        x_spec = pl.BlockSpec((tk, d_pad), lambda i, k: (k, 0))
        f_spec = pl.BlockSpec((tk, h_pad), lambda i, k: (k, 0))

    # ---- pass 1: chain 1 -> f (bf16) and dis*f (bf16, agg operand) ----
    f_bf, fs_bf = pl.pallas_call(
        functools.partial(_chain1_kernel, tk, resident),
        out_shape=(jax.ShapeDtypeStruct((n_pad, h_pad), jnp.bfloat16),
                   jax.ShapeDtypeStruct((n_pad, h_pad), jnp.bfloat16)),
        grid=grid,
        in_specs=[
            pl.BlockSpec((tm, tk), lambda i, k: (i, k)),          # A tile (int8)
            x_spec,                                               # dis*X (agg)
            pl.BlockSpec((tm, d_pad), lambda i, k: (i, 0)),       # X rows (norm)
            pl.BlockSpec((tm, 1), lambda i, k: (i, 0)),           # dis rows
            pl.BlockSpec((d_pad, h_pad), lambda i, k: (0, 0)),    # W1
            pl.BlockSpec((1, h_pad), lambda i, k: (0, 0)),        # b1
            smem,                                                 # s1 scale
        ],
        out_specs=(pl.BlockSpec((tm, h_pad), lambda i, k: (i, 0)),
                   pl.BlockSpec((tm, h_pad), lambda i, k: (i, 0))),
        scratch_shapes=[pltpu.VMEM((tm, d_pad), jnp.float32)],
        compiler_params=cparams,
    )(a_i8, x_agg, x_f32, dis_pad, w1, b1, s1)

    # ---- pass 2: chain 2 + residual -> y, per-tile GraphNorm stats ----
    y, s1_part, s2_part = pl.pallas_call(
        functools.partial(_chain2_kernel, tk, resident),
        out_shape=(
            jax.ShapeDtypeStruct((n_pad, d_pad), jnp.float32),
            jax.ShapeDtypeStruct((n_row_tiles * _SUBLANE, d_pad), jnp.float32),
            jax.ShapeDtypeStruct((n_row_tiles * _SUBLANE, d_pad), jnp.float32),
        ),
        grid=grid,
        in_specs=[
            pl.BlockSpec((tm, tk), lambda i, k: (i, k)),          # A tile (int8)
            f_spec,                                               # dis*f (agg)
            pl.BlockSpec((tm, h_pad), lambda i, k: (i, 0)),       # f rows (norm)
            pl.BlockSpec((tm, d_pad), lambda i, k: (i, 0)),       # X rows (residual)
            pl.BlockSpec((tm, 1), lambda i, k: (i, 0)),           # dis rows
            pl.BlockSpec((h_pad, d_pad), lambda i, k: (0, 0)),    # W2
            pl.BlockSpec((1, d_pad), lambda i, k: (0, 0)),        # b2
            smem,                                                 # s2 scale
        ],
        out_specs=(
            pl.BlockSpec((tm, d_pad), lambda i, k: (i, 0)),
            pl.BlockSpec((_SUBLANE, d_pad), lambda i, k: (i, 0)),
            pl.BlockSpec((_SUBLANE, d_pad), lambda i, k: (i, 0)),
        ),
        scratch_shapes=[pltpu.VMEM((tm, h_pad), jnp.float32)],
        compiler_params=cparams,
    )(a_i8, fs_bf, f_bf, x_f32, dis_pad, w2, b2, s2)

    # ---- GraphNorm stats: tiny reduction + fold into per-column scale/offset ----
    inv_n = 1.0 / float(n)
    mean = jnp.sum(s1_part, axis=0, keepdims=True) * inv_n        # E[y]
    mean_sq = jnp.sum(s2_part, axis=0, keepdims=True) * inv_n     # E[y^2]
    shift = mean * gm                                             # mean * mean_scale
    var = jnp.maximum(mean_sq - 2.0 * shift * mean + shift * shift, 0.0)
    inv_std = jax.lax.rsqrt(var + _GN_EPS)
    scale = gw * inv_std                                          # [1, Dp]
    offset = gb - scale * shift                                   # [1, Dp]

    # ---- pass 3: normalize + GELU (y aliased onto the output) ----
    out_pad = pl.pallas_call(
        _graphnorm_kernel,
        out_shape=jax.ShapeDtypeStruct((n_pad, d_pad), jnp.float32),
        grid=(n_row_tiles,),
        in_specs=[
            pl.BlockSpec((tm, d_pad), lambda i: (i, 0)),          # y rows
            pl.BlockSpec((1, d_pad), lambda i: (0, 0)),           # scale
            pl.BlockSpec((1, d_pad), lambda i: (0, 0)),           # offset
        ],
        out_specs=pl.BlockSpec((tm, d_pad), lambda i: (i, 0)),
        input_output_aliases={0: 0},
        compiler_params=pltpu.CompilerParams(
            dimension_semantics=("parallel",),
            vmem_limit_bytes=vmem_limit),
    )(y, scale, offset)

    return out_pad[:x_t.shape[0], :d]


_gcnffn_padded_jit = jax.jit(_gcnffn_padded, static_argnames=("n", "tm", "tk"))


def gcnffn_forward(x, graph, params):
    """One GCNFFN layer.  x: [input_dim, N] (the module transposes internally)."""
    x_t = jnp.transpose(x, (1, 0)).astype(jnp.float32)            # [N, D]
    return _gcnffn_padded_jit(x_t, graph["a"], graph["dis"], params,
                              n=graph["n"], tm=graph["tm"], tk=graph["tk"])


def gcn_forward(x, edge_index, layer_params):
    """GCN.forward: graph prep once, then sequentially apply GCNFFN layers.
    (As in the PyTorch code, stacking >1 layer is only shape-consistent when
    input_dim == num_nodes, since every layer transposes its input.)"""
    graph = prepare_graph(edge_index, x.shape[1])
    for p in layer_params:
        x = gcnffn_forward(x, graph, p)
    return x


# --------------------------------------------------------------------------
# Pure-JAX reference (emulates the kernel's bf16 storage of the agg operands)
# --------------------------------------------------------------------------
def gcnffn_reference(x, edge_index, params):
    with jax.default_matmul_precision("highest"):
        xt = jnp.transpose(x, (1, 0)).astype(jnp.float32)
        n = xt.shape[0]
        src, dst = edge_index[0], edge_index[1]
        a = jnp.zeros((n, n), jnp.float32).at[dst, src].add(1.0) + jnp.eye(n)
        deg = jnp.sum(a, axis=1)
        dis = jnp.where(deg > 0, 1.0 / jnp.sqrt(deg), 0.0)[:, None]

        def bf(v):
            return v.astype(jnp.bfloat16).astype(jnp.float32)

        def chain(feat_norm, feat_agg_scaled, w, b, s):
            z = dis * (a @ feat_agg_scaled)
            h = z @ w + b
            msg = _l2_normalize_rows(h)
            return _gelu(msg * _row_l2norm(feat_norm) * s[0, 0])

        f = chain(xt, bf(dis * xt), params["w1"], params["b1"], params["s1"])
        f2 = chain(bf(f), bf(dis * f), params["w2"], params["b2"], params["s2"])
        y = f2 + xt
        mean = jnp.mean(y, axis=0, keepdims=True)
        shift = mean * params["g_mean_scale"]
        var = jnp.mean((y - shift) ** 2, axis=0, keepdims=True)
        return _gelu(params["g_weight"] * (y - shift) / jnp.sqrt(var + _GN_EPS)
                     + params["g_bias"])


def init_params(key, input_dim, hidden_dim):
    k1, k2, k3, k4 = jax.random.split(key, 4)
    return {
        # GCNConv linear weights stored as [in, out]
        "w1": (jax.random.normal(k1, (input_dim, hidden_dim), jnp.float32)
               / math.sqrt(input_dim)),
        "b1": 0.1 * jax.random.normal(k2, (1, hidden_dim), jnp.float32),
        "s1": jnp.ones((1, 1), jnp.float32),            # MessageNorm scale
        "w2": (jax.random.normal(k3, (hidden_dim, input_dim), jnp.float32)
               / math.sqrt(hidden_dim)),
        "b2": 0.1 * jax.random.normal(k4, (1, input_dim), jnp.float32),
        "s2": jnp.ones((1, 1), jnp.float32),
        # GraphNorm parameters (PyG defaults: weight=1, bias=0, mean_scale=1)
        "g_weight": jnp.ones((1, input_dim), jnp.float32),
        "g_bias": jnp.zeros((1, input_dim), jnp.float32),
        "g_mean_scale": jnp.ones((1, input_dim), jnp.float32),
    }


if __name__ == "__main__":
    INPUT_DIM = 8
    HIDDEN_DIM = 32
    NUM_NODES = 16

    key = jax.random.PRNGKey(0)
    kx, kp = jax.random.split(key)

    # module input: [input_dim, N] (it transposes internally)
    x = jax.random.normal(kx, (INPUT_DIM, NUM_NODES), jnp.float32)

    # undirected ring graph, no self loops, no duplicate edges
    idx = jnp.arange(NUM_NODES, dtype=jnp.int32)
    nxt = (idx + 1) % NUM_NODES
    edge_index = jnp.stack(
        [jnp.concatenate([idx, nxt]), jnp.concatenate([nxt, idx])], axis=0
    )  # [2, 2N]

    params = init_params(kp, INPUT_DIM, HIDDEN_DIM)

    out = gcn_forward(x, edge_index, [params])       # GCN with layers=1
    out = jax.block_until_ready(out)

    ref = gcnffn_reference(x, edge_index, params)
    assert out.shape == (NUM_NODES, INPUT_DIM)
    assert jnp.allclose(out, ref, rtol=2e-3, atol=2e-3), "mismatch vs reference"

    print("KERNEL_OK")
</pallas_src>

<mosaic_0001>
module attributes {stable_mosaic.version = 11 : i64} {
  func.func @_chain1_kernel(%arg0: i32, %arg1: i32, %arg2: memref<128x128xi8, #tpu.memory_space<vmem>>, %arg3: memref<128x128xbf16, #tpu.memory_space<vmem>>, %arg4: memref<128x128xf32, #tpu.memory_space<vmem>>, %arg5: memref<128x1xf32, #tpu.memory_space<vmem>>, %arg6: memref<128x128xf32, #tpu.memory_space<vmem>>, %arg7: memref<1x128xf32, #tpu.memory_space<vmem>>, %arg8: memref<1x1xf32, #tpu.memory_space<smem>>, %arg9: memref<128x128xbf16, #tpu.memory_space<vmem>>, %arg10: memref<128x128xbf16, #tpu.memory_space<vmem>>, %arg11: memref<128x128xf32, #tpu.memory_space<vmem>>) attributes {dimension_semantics = [#tpu.dimension_semantics<parallel>, #tpu.dimension_semantics<arbitrary>], iteration_bounds = array<i64: 1, 1>, scalar_prefetch = 0 : i64, scratch_operands = 1 : i64, tpu.core_type = #tpu.core_type<tc>, window_params = [{transform_indices = @transform_0, window_bounds = array<i64: 128, 128>}, {pipeline_mode = #tpu.pipeline_mode<synchronous>, transform_indices = @transform_1, window_bounds = array<i64: 128, 128>}, {transform_indices = @transform_2, window_bounds = array<i64: 128, 128>}, {transform_indices = @transform_3, window_bounds = array<i64: 128, 1>}, {pipeline_mode = #tpu.pipeline_mode<synchronous>, transform_indices = @transform_4, window_bounds = array<i64: 128, 128>}, {pipeline_mode = #tpu.pipeline_mode<synchronous>, transform_indices = @transform_5, window_bounds = array<i64: 1, 128>}, {transform_indices = @transform_6, window_bounds = array<i64: 1, 1>}, {transform_indices = @transform_7, window_bounds = array<i64: 128, 128>}, {transform_indices = @transform_8, window_bounds = array<i64: 128, 128>}]} {
    %c0_i32 = arith.constant 0 : i32
    %0 = arith.cmpi eq, %arg1, %c0_i32 : i32
    %1 = arith.extui %0 : i1 to i32
    %c0_i32_0 = arith.constant 0 : i32
    %2 = arith.cmpi ne, %1, %c0_i32_0 : i32
    scf.if %2 {
      %cst_9 = arith.constant 0.000000e+00 : f32
      %16 = vector.broadcast %cst_9 : f32 to vector<128x128xf32>
      %c0_10 = arith.constant 0 : index
      %c0_11 = arith.constant 0 : index
      %17 = vector.load %arg11[%c0_10, %c0_11] : memref<128x128xf32, #tpu.memory_space<vmem>>, vector<128x128xf32>
      tpu.vector_store %arg11[%c0_10, %c0_11], %16 {strides = array<i32>} : memref<128x128xf32, #tpu.memory_space<vmem>>, vector<128x128xf32>,
    } else {
    }
    %c128_i32 = arith.constant 128 : i32
    %3 = arith.muli %arg1, %c128_i32 : i32
    %4 = tpu.assume_multiple %3, 128 : i32
    %5 = arith.index_cast %4 : i32 to index
    %c0 = arith.constant 0 : index
    %6 = vector.load %arg3[%5, %c0] : memref<128x128xbf16, #tpu.memory_space<vmem>>, vector<128x128xbf16>
    %c0_1 = arith.constant 0 : index
    %c0_2 = arith.constant 0 : index
    %7 = vector.load %arg11[%c0_1, %c0_2] : memref<128x128xf32, #tpu.memory_space<vmem>>, vector<128x128xf32>
    %c0_3 = arith.constant 0 : index
    %c0_4 = arith.constant 0 : index
    %8 = vector.load %arg2[%c0_3, %c0_4] : memref<128x128xi8, #tpu.memory_space<vmem>>, vector<128x128xi8>
    %9 = arith.sitofp %8 : vector<128x128xi8> to vector<128x128xbf16>
    %cst = arith.constant dense<0.000000e+00> : vector<128x128xf32>
    %10 = tpu.matmul %9, %6, %cst {dimension_numbers = #tpu.dot_dimension_numbers<[1], [0], [0], [1], [0, 0, 1, 1], [], []>} : vector<128x128xbf16>, vector<128x128xbf16>, vector<128x128xf32> -> vector<128x128xf32>
    %11 = arith.addf %7, %10 : vector<128x128xf32>
    %c0_5 = arith.constant 0 : index
    %c0_6 = arith.constant 0 : index
    %12 = vector.load %arg11[%c0_5, %c0_6] : memref<128x128xf32, #tpu.memory_space<vmem>>, vector<128x128xf32>
    tpu.vector_store %arg11[%c0_5, %c0_6], %11 {strides = array<i32>} : memref<128x128xf32, #tpu.memory_space<vmem>>, vector<128x128xf32>,
    %c0_i32_7 = arith.constant 0 : i32
    %13 = arith.cmpi eq, %arg1, %c0_i32_7 : i32
    %14 = arith.extui %13 : i1 to i32
    %c0_i32_8 = arith.constant 0 : i32
    %15 = arith.cmpi ne, %14, %c0_i32_8 : i32
    scf.if %15 {
      %c0_9 = arith.constant 0 : index
      %c0_10 = arith.constant 0 : index
      %16 = vector.load %arg5[%c0_9, %c0_10] : memref<128x1xf32, #tpu.memory_space<vmem>>, vector<128x1xf32>
      %c0_11 = arith.constant 0 : index
      %c0_12 = arith.constant 0 : index
      %17 = vector.load %arg11[%c0_11, %c0_12] : memref<128x128xf32, #tpu.memory_space<vmem>>, vector<128x128xf32>
      %18 = vector.broadcast %16 : vector<128x1xf32> to vector<128x128xf32>
      %19 = arith.mulf %17, %18 : vector<128x128xf32>
      %c0_13 = arith.constant 0 : index
      %c0_14 = arith.constant 0 : index
      %20 = vector.load %arg6[%c0_13, %c0_14] : memref<128x128xf32, #tpu.memory_space<vmem>>, vector<128x128xf32>
      %cst_15 = arith.constant dense<0.000000e+00> : vector<128x128xf32>
      %21 = tpu.matmul %19, %20, %cst_15 {dimension_numbers = #tpu.dot_dimension_numbers<[1], [0], [0], [1], [0, 0, 1, 1], [], []>} : vector<128x128xf32>, vector<128x128xf32>, vector<128x128xf32> -> vector<128x128xf32>
      %c0_16 = arith.constant 0 : index
      %c0_17 = arith.constant 0 : index
      %22 = vector.load %arg7[%c0_16, %c0_17] : memref<1x128xf32, #tpu.memory_space<vmem>>, vector<1x128xf32>
      %23 = vector.broadcast %22 : vector<1x128xf32> to vector<128x128xf32>
      %24 = arith.addf %21, %23 : vector<128x128xf32>
      %25 = arith.mulf %24, %24 : vector<128x128xf32>
      %cst_18 = arith.constant dense<0.000000e+00> : vector<128xf32>
      %26 = vector.multi_reduction <add>, %25, %cst_18 [1] : vector<128x128xf32> to vector<128xf32>
      %27 = vector.shape_cast %26 : vector<128xf32> to vector<128x1xf32>
      %cst_19 = arith.constant 1.000000e-24 : f32
      %28 = vector.broadcast %cst_19 : f32 to vector<128x1xf32>
      %29 = arith.maximumf %27, %28 : vector<128x1xf32>
      %30 = math.rsqrt %29 : vector<128x1xf32>
      %31 = vector.broadcast %30 : vector<128x1xf32> to vector<128x128xf32>
      %32 = arith.mulf %24, %31 : vector<128x128xf32>
      %c0_20 = arith.constant 0 : index
      %c0_21 = arith.constant 0 : index
      %33 = vector.load %arg4[%c0_20, %c0_21] : memref<128x128xf32, #tpu.memory_space<vmem>>, vector<128x128xf32>
      %34 = arith.mulf %33, %33 : vector<128x128xf32>
      %cst_22 = arith.constant dense<0.000000e+00> : vector<128xf32>
      %35 = vector.multi_reduction <add>, %34, %cst_22 [1] : vector<128x128xf32> to vector<128xf32>
      %36 = vector.shape_cast %35 : vector<128xf32> to vector<128x1xf32>
      %37 = math.sqrt %36 : vector<128x1xf32>
      %38 = vector.broadcast %37 : vector<128x1xf32> to vector<128x128xf32>
      %39 = arith.mulf %32, %38 : vector<128x128xf32>
      %c0_23 = arith.constant 0 : index
      %c0_24 = arith.constant 0 : index
      %40 = memref.load %arg8[%c0_23, %c0_24] : memref<1x1xf32, #tpu.memory_space<smem>>
      %41 = vector.broadcast %40 : f32 to vector<128x128xf32>
      %42 = arith.mulf %39, %41 : vector<128x128xf32>
      %cst_25 = arith.constant 5.000000e-01 : f32
      %43 = vector.broadcast %cst_25 : f32 to vector<128x128xf32>
      %44 = arith.mulf %43, %42 : vector<128x128xf32>
      %cst_26 = arith.constant 0.707106769 : f32
      %45 = vector.broadcast %cst_26 : f32 to vector<128x128xf32>
      %46 = arith.mulf %42, %45 : vector<128x128xf32>
      %47 = math.erf %46 : vector<128x128xf32>
      %cst_27 = arith.constant 1.000000e+00 : f32
      %48 = vector.broadcast %cst_27 : f32 to vector<128x128xf32>
      %49 = arith.addf %48, %47 : vector<128x128xf32>
      %50 = arith.mulf %44, %49 : vector<128x128xf32>
      %51 = arith.truncf %50 : vector<128x128xf32> to vector<128x128xbf16>
      %c0_28 = arith.constant 0 : index
      %c0_29 = arith.constant 0 : index
      %52 = vector.load %arg9[%c0_28, %c0_29] : memref<128x128xbf16, #tpu.memory_space<vmem>>, vector<128x128xbf16>
      tpu.vector_store %arg9[%c0_28, %c0_29], %51 {strides = array<i32>} : memref<128x128xbf16, #tpu.memory_space<vmem>>, vector<128x128xbf16>,
      %53 = vector.broadcast %16 : vector<128x1xf32> to vector<128x128xf32>
      %54 = arith.mulf %50, %53 : vector<128x128xf32>
      %55 = arith.truncf %54 : vector<128x128xf32> to vector<128x128xbf16>
      %c0_30 = arith.constant 0 : index
      %c0_31 = arith.constant 0 : index
      %56 = vector.load %arg10[%c0_30, %c0_31] : memref<128x128xbf16, #tpu.memory_space<vmem>>, vector<128x128xbf16>
      tpu.vector_store %arg10[%c0_30, %c0_31], %55 {strides = array<i32>} : memref<128x128xbf16, #tpu.memory_space<vmem>>, vector<128x128xbf16>,
    } else {
    }
    return
  }
  func.func @transform_0(%arg0: i32, %arg1: i32) -> (i32, i32) {
    %c0_i32 = arith.constant 0 : i32
    return %arg0, %arg1 : i32, i32
  }
  func.func @transform_1(%arg0: i32, %arg1: i32) -> (i32, i32) {
    %c0_i32 = arith.constant 0 : i32
    %c0_i32_0 = arith.constant 0 : i32
    %c0_i32_1 = arith.constant 0 : i32
    return %c0_i32, %c0_i32_0 : i32, i32
  }
  func.func @transform_2(%arg0: i32, %arg1: i32) -> (i32, i32) {
    %c0_i32 = arith.constant 0 : i32
    %c0_i32_0 = arith.constant 0 : i32
    return %arg0, %c0_i32 : i32, i32
  }
  func.func @transform_3(%arg0: i32, %arg1: i32) -> (i32, i32) {
    %c0_i32 = arith.constant 0 : i32
    %c0_i32_0 = arith.constant 0 : i32
    return %arg0, %c0_i32 : i32, i32
  }
  func.func @transform_4(%arg0: i32, %arg1: i32) -> (i32, i32) {
    %c0_i32 = arith.constant 0 : i32
    %c0_i32_0 = arith.constant 0 : i32
    %c0_i32_1 = arith.constant 0 : i32
    return %c0_i32, %c0_i32_0 : i32, i32
  }
  func.func @transform_5(%arg0: i32, %arg1: i32) -> (i32, i32) {
    %c0_i32 = arith.constant 0 : i32
    %c0_i32_0 = arith.constant 0 : i32
    %c0_i32_1 = arith.constant 0 : i32
    return %c0_i32, %c0_i32_0 : i32, i32
  }
  func.func @transform_6(%arg0: i32, %arg1: i32) -> (i32, i32) {
    %c0_i32 = arith.constant 0 : i32
    %c0_i32_0 = arith.constant 0 : i32
    %c0_i32_1 = arith.constant 0 : i32
    return %c0_i32, %c0_i32_0 : i32, i32
  }
  func.func @transform_7(%arg0: i32, %arg1: i32) -> (i32, i32) {
    %c0_i32 = arith.constant 0 : i32
    %c0_i32_0 = arith.constant 0 : i32
    return %arg0, %c0_i32 : i32, i32
  }
  func.func @transform_8(%arg0: i32, %arg1: i32) -> (i32, i32) {
    %c0_i32 = arith.constant 0 : i32
    %c0_i32_0 = arith.constant 0 : i32
    return %arg0, %c0_i32 : i32, i32
  }
}

module attributes {stable_mosaic.version = 11 : i64} {
  func.func @_graphnorm_kernel(%arg0: i32, %arg1: memref<128x128xf32, #tpu.memory_space<vmem>>, %arg2: memref<1x128xf32, #tpu.memory_space<vmem>>, %arg3: memref<1x128xf32, #tpu.memory_space<vmem>>, %arg4: memref<128x128xf32, #tpu.memory_space<vmem>>) attributes {dimension_semantics = [#tpu.dimension_semantics<parallel>], iteration_bounds = array<i64: 1>, scalar_prefetch = 0 : i64, scratch_operands = 0 : i64, tpu.core_type = #tpu.core_type<tc>, window_params = [{transform_indices = @transform_0, window_bounds = array<i64: 128, 128>}, {pipeline_mode = #tpu.pipeline_mode<synchronous>, transform_indices = @transform_1, window_bounds = array<i64: 1, 128>}, {pipeline_mode = #tpu.pipeline_mode<synchronous>, transform_indices = @transform_2, window_bounds = array<i64: 1, 128>}, {transform_indices = @transform_3, window_bounds = array<i64: 128, 128>}]} {
    %c0 = arith.constant 0 : index
    %c0_0 = arith.constant 0 : index
    %0 = vector.load %arg1[%c0, %c0_0] : memref<128x128xf32, #tpu.memory_space<vmem>>, vector<128x128xf32>
    %c0_1 = arith.constant 0 : index
    %c0_2 = arith.constant 0 : index
    %1 = vector.load %arg2[%c0_1, %c0_2] : memref<1x128xf32, #tpu.memory_space<vmem>>, vector<1x128xf32>
    %2 = vector.broadcast %1 : vector<1x128xf32> to vector<128x128xf32>
    %3 = arith.mulf %0, %2 : vector<128x128xf32>
    %c0_3 = arith.constant 0 : index
    %c0_4 = arith.constant 0 : index
    %4 = vector.load %arg3[%c0_3, %c0_4] : memref<1x128xf32, #tpu.memory_space<vmem>>, vector<1x128xf32>
    %5 = vector.broadcast %4 : vector<1x128xf32> to vector<128x128xf32>
    %6 = arith.addf %3, %5 : vector<128x128xf32>
    %cst = arith.constant 5.000000e-01 : f32
    %7 = vector.broadcast %cst : f32 to vector<128x128xf32>
    %8 = arith.mulf %7, %6 : vector<128x128xf32>
    %cst_5 = arith.constant 0.707106769 : f32
    %9 = vector.broadcast %cst_5 : f32 to vector<128x128xf32>
    %10 = arith.mulf %6, %9 : vector<128x128xf32>
    %11 = math.erf %10 : vector<128x128xf32>
    %cst_6 = arith.constant 1.000000e+00 : f32
    %12 = vector.broadcast %cst_6 : f32 to vector<128x128xf32>
    %13 = arith.addf %12, %11 : vector<128x128xf32>
    %14 = arith.mulf %8, %13 : vector<128x128xf32>
    %c0_7 = arith.constant 0 : index
    %c0_8 = arith.constant 0 : index
    %15 = vector.load %arg4[%c0_7, %c0_8] : memref<128x128xf32, #tpu.memory_space<vmem>>, vector<128x128xf32>
    tpu.vector_store %arg4[%c0_7, %c0_8], %14 {strides = array<i32>} : memref<128x128xf32, #tpu.memory_space<vmem>>, vector<128x128xf32>,
    return
  }
  func.func @transform_0(%arg0: i32) -> (i32, i32) {
    %c0_i32 = arith.constant 0 : i32
    %c0_i32_0 = arith.constant 0 : i32
    return %arg0, %c0_i32 : i32, i32
  }
  func.func @transform_1(%arg0: i32) -> (i32, i32) {
    %c0_i32 = arith.constant 0 : i32
    %c0_i32_0 = arith.constant 0 : i32
    %c0_i32_1 = arith.constant 0 : i32
    return %c0_i32, %c0_i32_0 : i32, i32
  }
  func.func @transform_2(%arg0: i32) -> (i32, i32) {
    %c0_i32 = arith.constant 0 : i32
    %c0_i32_0 = arith.constant 0 : i32
    %c0_i32_1 = arith.constant 0 : i32
    return %c0_i32, %c0_i32_0 : i32, i32
  }
  func.func @transform_3(%arg0: i32) -> (i32, i32) {
    %c0_i32 = arith.constant 0 : i32
    %c0_i32_0 = arith.constant 0 : i32
    return %arg0, %c0_i32 : i32, i32
  }
}

module attributes {stable_mosaic.version = 11 : i64} {
  func.func @_chain2_kernel(%arg0: i32, %arg1: i32, %arg2: memref<128x128xi8, #tpu.memory_space<vmem>>, %arg3: memref<128x128xbf16, #tpu.memory_space<vmem>>, %arg4: memref<128x128xbf16, #tpu.memory_space<vmem>>, %arg5: memref<128x128xf32, #tpu.memory_space<vmem>>, %arg6: memref<128x1xf32, #tpu.memory_space<vmem>>, %arg7: memref<128x128xf32, #tpu.memory_space<vmem>>, %arg8: memref<1x128xf32, #tpu.memory_space<vmem>>, %arg9: memref<1x1xf32, #tpu.memory_space<smem>>, %arg10: memref<128x128xf32, #tpu.memory_space<vmem>>, %arg11: memref<8x128xf32, #tpu.memory_space<vmem>>, %arg12: memref<8x128xf32, #tpu.memory_space<vmem>>, %arg13: memref<128x128xf32, #tpu.memory_space<vmem>>) attributes {dimension_semantics = [#tpu.dimension_semantics<parallel>, #tpu.dimension_semantics<arbitrary>], iteration_bounds = array<i64: 1, 1>, scalar_prefetch = 0 : i64, scratch_operands = 1 : i64, tpu.core_type = #tpu.core_type<tc>, window_params = [{transform_indices = @transform_0, window_bounds = array<i64: 128, 128>}, {pipeline_mode = #tpu.pipeline_mode<synchronous>, transform_indices = @transform_1, window_bounds = array<i64: 128, 128>}, {transform_indices = @transform_2, window_bounds = array<i64: 128, 128>}, {transform_indices = @transform_3, window_bounds = array<i64: 128, 128>}, {transform_indices = @transform_4, window_bounds = array<i64: 128, 1>}, {pipeline_mode = #tpu.pipeline_mode<synchronous>, transform_indices = @transform_5, window_bounds = array<i64: 128, 128>}, {pipeline_mode = #tpu.pipeline_mode<synchronous>, transform_indices = @transform_6, window_bounds = array<i64: 1, 128>}, {transform_indices = @transform_7, window_bounds = array<i64: 1, 1>}, {transform_indices = @transform_8, window_bounds = array<i64: 128, 128>}, {transform_indices = @transform_9, window_bounds = array<i64: 8, 128>}, {transform_indices = @transform_10, window_bounds = array<i64: 8, 128>}]} {
    %c0_i32 = arith.constant 0 : i32
    %0 = arith.cmpi eq, %arg1, %c0_i32 : i32
    %1 = arith.extui %0 : i1 to i32
    %c0_i32_0 = arith.constant 0 : i32
    %2 = arith.cmpi ne, %1, %c0_i32_0 : i32
    scf.if %2 {
      %cst_9 = arith.constant 0.000000e+00 : f32
      %16 = vector.broadcast %cst_9 : f32 to vector<128x128xf32>
      %c0_10 = arith.constant 0 : index
      %c0_11 = arith.constant 0 : index
      %17 = vector.load %arg13[%c0_10, %c0_11] : memref<128x128xf32, #tpu.memory_space<vmem>>, vector<128x128xf32>
      tpu.vector_store %arg13[%c0_10, %c0_11], %16 {strides = array<i32>} : memref<128x128xf32, #tpu.memory_space<vmem>>, vector<128x128xf32>,
    } else {
    }
    %c128_i32 = arith.constant 128 : i32
    %3 = arith.muli %arg1, %c128_i32 : i32
    %4 = tpu.assume_multiple %3, 128 : i32
    %5 = arith.index_cast %4 : i32 to index
    %c0 = arith.constant 0 : index
    %6 = vector.load %arg3[%5, %c0] : memref<128x128xbf16, #tpu.memory_space<vmem>>, vector<128x128xbf16>
    %c0_1 = arith.constant 0 : index
    %c0_2 = arith.constant 0 : index
    %7 = vector.load %arg13[%c0_1, %c0_2] : memref<128x128xf32, #tpu.memory_space<vmem>>, vector<128x128xf32>
    %c0_3 = arith.constant 0 : index
    %c0_4 = arith.constant 0 : index
    %8 = vector.load %arg2[%c0_3, %c0_4] : memref<128x128xi8, #tpu.memory_space<vmem>>, vector<128x128xi8>
    %9 = arith.sitofp %8 : vector<128x128xi8> to vector<128x128xbf16>
    %cst = arith.constant dense<0.000000e+00> : vector<128x128xf32>
    %10 = tpu.matmul %9, %6, %cst {dimension_numbers = #tpu.dot_dimension_numbers<[1], [0], [0], [1], [0, 0, 1, 1], [], []>} : vector<128x128xbf16>, vector<128x128xbf16>, vector<128x128xf32> -> vector<128x128xf32>
    %11 = arith.addf %7, %10 : vector<128x128xf32>
    %c0_5 = arith.constant 0 : index
    %c0_6 = arith.constant 0 : index
    %12 = vector.load %arg13[%c0_5, %c0_6] : memref<128x128xf32, #tpu.memory_space<vmem>>, vector<128x128xf32>
    tpu.vector_store %arg13[%c0_5, %c0_6], %11 {strides = array<i32>} : memref<128x128xf32, #tpu.memory_space<vmem>>, vector<128x128xf32>,
    %c0_i32_7 = arith.constant 0 : i32
    %13 = arith.cmpi eq, %arg1, %c0_i32_7 : i32
    %14 = arith.extui %13 : i1 to i32
    %c0_i32_8 = arith.constant 0 : i32
    %15 = arith.cmpi ne, %14, %c0_i32_8 : i32
    scf.if %15 {
      %c0_9 = arith.constant 0 : index
      %c0_10 = arith.constant 0 : index
      %16 = vector.load %arg6[%c0_9, %c0_10] : memref<128x1xf32, #tpu.memory_space<vmem>>, vector<128x1xf32>
      %c0_11 = arith.constant 0 : index
      %c0_12 = arith.constant 0 : index
      %17 = vector.load %arg13[%c0_11, %c0_12] : memref<128x128xf32, #tpu.memory_space<vmem>>, vector<128x128xf32>
      %18 = vector.broadcast %16 : vector<128x1xf32> to vector<128x128xf32>
      %19 = arith.mulf %17, %18 : vector<128x128xf32>
      %c0_13 = arith.constant 0 : index
      %c0_14 = arith.constant 0 : index
      %20 = vector.load %arg7[%c0_13, %c0_14] : memref<128x128xf32, #tpu.memory_space<vmem>>, vector<128x128xf32>
      %cst_15 = arith.constant dense<0.000000e+00> : vector<128x128xf32>
      %21 = tpu.matmul %19, %20, %cst_15 {dimension_numbers = #tpu.dot_dimension_numbers<[1], [0], [0], [1], [0, 0, 1, 1], [], []>} : vector<128x128xf32>, vector<128x128xf32>, vector<128x128xf32> -> vector<128x128xf32>
      %c0_16 = arith.constant 0 : index
      %c0_17 = arith.constant 0 : index
      %22 = vector.load %arg8[%c0_16, %c0_17] : memref<1x128xf32, #tpu.memory_space<vmem>>, vector<1x128xf32>
      %23 = vector.broadcast %22 : vector<1x128xf32> to vector<128x128xf32>
      %24 = arith.addf %21, %23 : vector<128x128xf32>
      %25 = arith.mulf %24, %24 : vector<128x128xf32>
      %cst_18 = arith.constant dense<0.000000e+00> : vector<128xf32>
      %26 = vector.multi_reduction <add>, %25, %cst_18 [1] : vector<128x128xf32> to vector<128xf32>
      %27 = vector.shape_cast %26 : vector<128xf32> to vector<128x1xf32>
      %cst_19 = arith.constant 1.000000e-24 : f32
      %28 = vector.broadcast %cst_19 : f32 to vector<128x1xf32>
      %29 = arith.maximumf %27, %28 : vector<128x1xf32>
      %30 = math.rsqrt %29 : vector<128x1xf32>
      %31 = vector.broadcast %30 : vector<128x1xf32> to vector<128x128xf32>
      %32 = arith.mulf %24, %31 : vector<128x128xf32>
      %c0_20 = arith.constant 0 : index
      %c0_21 = arith.constant 0 : index
      %33 = vector.load %arg4[%c0_20, %c0_21] : memref<128x128xbf16, #tpu.memory_space<vmem>>, vector<128x128xbf16>
      %34 = arith.extf %33 : vector<128x128xbf16> to vector<128x128xf32>
      %35 = arith.mulf %34, %34 : vector<128x128xf32>
      %cst_22 = arith.constant dense<0.000000e+00> : vector<128xf32>
      %36 = vector.multi_reduction <add>, %35, %cst_22 [1] : vector<128x128xf32> to vector<128xf32>
      %37 = vector.shape_cast %36 : vector<128xf32> to vector<128x1xf32>
      %38 = math.sqrt %37 : vector<128x1xf32>
      %39 = vector.broadcast %38 : vector<128x1xf32> to vector<128x128xf32>
      %40 = arith.mulf %32, %39 : vector<128x128xf32>
      %c0_23 = arith.constant 0 : index
      %c0_24 = arith.constant 0 : index
      %41 = memref.load %arg9[%c0_23, %c0_24] : memref<1x1xf32, #tpu.memory_space<smem>>
      %42 = vector.broadcast %41 : f32 to vector<128x128xf32>
      %43 = arith.mulf %40, %42 : vector<128x128xf32>
      %cst_25 = arith.constant 5.000000e-01 : f32
      %44 = vector.broadcast %cst_25 : f32 to vector<128x128xf32>
      %45 = arith.mulf %44, %43 : vector<128x128xf32>
      %cst_26 = arith.constant 0.707106769 : f32
      %46 = vector.broadcast %cst_26 : f32 to vector<128x128xf32>
      %47 = arith.mulf %43, %46 : vector<128x128xf32>
      %48 = math.erf %47 : vector<128x128xf32>
      %cst_27 = arith.constant 1.000000e+00 : f32
      %49 = vector.broadcast %cst_27 : f32 to vector<128x128xf32>
      %50 = arith.addf %49, %48 : vector<128x128xf32>
      %51 = arith.mulf %45, %50 : vector<128x128xf32>
      %c0_28 = arith.constant 0 : index
      %c0_29 = arith.constant 0 : index
      %52 = vector.load %arg5[%c0_28, %c0_29] : memref<128x128xf32, #tpu.memory_space<vmem>>, vector<128x128xf32>
      %53 = arith.addf %51, %52 : vector<128x128xf32>
      %c0_30 = arith.constant 0 : index
      %c0_31 = arith.constant 0 : index
      %54 = vector.load %arg10[%c0_30, %c0_31] : memref<128x128xf32, #tpu.memory_space<vmem>>, vector<128x128xf32>
      tpu.vector_store %arg10[%c0_30, %c0_31], %53 {strides = array<i32>} : memref<128x128xf32, #tpu.memory_space<vmem>>, vector<128x128xf32>,
      %cst_32 = arith.constant dense<0.000000e+00> : vector<128xf32>
      %55 = vector.multi_reduction <add>, %53, %cst_32 [0] : vector<128x128xf32> to vector<128xf32>
      %56 = vector.shape_cast %55 : vector<128xf32> to vector<1x128xf32>
      %57 = arith.mulf %53, %53 : vector<128x128xf32>
      %cst_33 = arith.constant dense<0.000000e+00> : vector<128xf32>
      %58 = vector.multi_reduction <add>, %57, %cst_33 [0] : vector<128x128xf32> to vector<128xf32>
      %59 = vector.shape_cast %58 : vector<128xf32> to vector<1x128xf32>
      %60 = tpu.iota {dimensions = array<i32: 0>} : vector<8x128xi32>
      %c0_i32_34 = arith.constant 0 : i32
      %61 = vector.broadcast %c0_i32_34 : i32 to vector<8x128xi32>
      %62 = arith.cmpi eq, %60, %61 : vector<8x128xi32>
      %63 = vector.shape_cast %56 : vector<1x128xf32> to vector<1x128xf32>
      %64 = vector.broadcast %63 : vector<1x128xf32> to vector<8x128xf32>
      %cst_35 = arith.constant 0.000000e+00 : f32
      %65 = vector.broadcast %cst_35 : f32 to vector<8x128xf32>
      %66 = arith.select %62, %64, %65 : vector<8x128xi1>, vector<8x128xf32>
      %c0_36 = arith.constant 0 : index
      %c0_37 = arith.constant 0 : index
      %67 = vector.load %arg11[%c0_36, %c0_37] : memref<8x128xf32, #tpu.memory_space<vmem>>, vector<8x128xf32>
      tpu.vector_store %arg11[%c0_36, %c0_37], %66 {strides = array<i32>} : memref<8x128xf32, #tpu.memory_space<vmem>>, vector<8x128xf32>,
      %c0_i32_38 = arith.constant 0 : i32
      %68 = vector.broadcast %c0_i32_38 : i32 to vector<8x128xi32>
      %69 = arith.cmpi eq, %60, %68 : vector<8x128xi32>
      %70 = vector.shape_cast %59 : vector<1x128xf32> to vector<1x128xf32>
      %71 = vector.broadcast %70 : vector<1x128xf32> to vector<8x128xf32>
      %cst_39 = arith.constant 0.000000e+00 : f32
      %72 = vector.broadcast %cst_39 : f32 to vector<8x128xf32>
      %73 = arith.select %69, %71, %72 : vector<8x128xi1>, vector<8x128xf32>
      %c0_40 = arith.constant 0 : index
      %c0_41 = arith.constant 0 : index
      %74 = vector.load %arg12[%c0_40, %c0_41] : memref<8x128xf32, #tpu.memory_space<vmem>>, vector<8x128xf32>
      tpu.vector_store %arg12[%c0_40, %c0_41], %73 {strides = array<i32>} : memref<8x128xf32, #tpu.memory_space<vmem>>, vector<8x128xf32>,
    } else {
    }
    return
  }
  func.func @transform_0(%arg0: i32, %arg1: i32) -> (i32, i32) {
    %c0_i32 = arith.constant 0 : i32
    return %arg0, %arg1 : i32, i32
  }
  func.func @transform_1(%arg0: i32, %arg1: i32) -> (i32, i32) {
    %c0_i32 = arith.constant 0 : i32
    %c0_i32_0 = arith.constant 0 : i32
    %c0_i32_1 = arith.constant 0 : i32
    return %c0_i32, %c0_i32_0 : i32, i32
  }
  func.func @transform_2(%arg0: i32, %arg1: i32) -> (i32, i32) {
    %c0_i32 = arith.constant 0 : i32
    %c0_i32_0 = arith.constant 0 : i32
    return %arg0, %c0_i32 : i32, i32
  }
  func.func @transform_3(%arg0: i32, %arg1: i32) -> (i32, i32) {
    %c0_i32 = arith.constant 0 : i32
    %c0_i32_0 = arith.constant 0 : i32
    return %arg0, %c0_i32 : i32, i32
  }
  func.func @transform_4(%arg0: i32, %arg1: i32) -> (i32, i32) {
    %c0_i32 = arith.constant 0 : i32
    %c0_i32_0 = arith.constant 0 : i32
    return %arg0, %c0_i32 : i32, i32
  }
  func.func @transform_5(%arg0: i32, %arg1: i32) -> (i32, i32) {
    %c0_i32 = arith.constant 0 : i32
    %c0_i32_0 = arith.constant 0 : i32
    %c0_i32_1 = arith.constant 0 : i32
    return %c0_i32, %c0_i32_0 : i32, i32
  }
  func.func @transform_6(%arg0: i32, %arg1: i32) -> (i32, i32) {
    %c0_i32 = arith.constant 0 : i32
    %c0_i32_0 = arith.constant 0 : i32
    %c0_i32_1 = arith.constant 0 : i32
    return %c0_i32, %c0_i32_0 : i32, i32
  }
  func.func @transform_7(%arg0: i32, %arg1: i32) -> (i32, i32) {
    %c0_i32 = arith.constant 0 : i32
    %c0_i32_0 = arith.constant 0 : i32
    %c0_i32_1 = arith.constant 0 : i32
    return %c0_i32, %c0_i32_0 : i32, i32
  }
  func.func @transform_8(%arg0: i32, %arg1: i32) -> (i32, i32) {
    %c0_i32 = arith.constant 0 : i32
    %c0_i32_0 = arith.constant 0 : i32
    return %arg0, %c0_i32 : i32, i32
  }
  func.func @transform_9(%arg0: i32, %arg1: i32) -> (i32, i32) {
    %c0_i32 = arith.constant 0 : i32
    %c0_i32_0 = arith.constant 0 : i32
    return %arg0, %c0_i32 : i32, i32
  }
  func.func @transform_10(%arg0: i32, %arg1: i32) -> (i32, i32) {
    %c0_i32 = arith.constant 0 : i32
    %c0_i32_0 = arith.constant 0 : i32
    return %arg0, %c0_i32 : i32, i32
  }
}

</mosaic_0001>

<llo_original>
// kernel: _gcnffn_padded.5
$region0: #{_gcnffn_padded.5}
  #allocation0 [shape = 'u32[]', space=smem, size = 0x4, offset = 0x4, fixed_abs, tag = 'smem constant byte address 0x4 - core index']
  #allocation1 [shape = 'u32[144,128]{1,0:T(1,128)}', space=vmem, size = 0x12000, scoped, tag = 'internal scratch']
  %s0 = inlined_call_operand.vmem [shape: f32[128,128], index: 0, kind: input, shape index: {}, may-alias: {0,3}]
  %s1 = inlined_call_operand.vmem [shape: f32[1,128], index: 1, kind: input, shape index: {}]
  %s2 = inlined_call_operand.vmem [shape: f32[1,128], index: 2, kind: input, shape index: {}]
  %s3 = inlined_call_operand.vmem [shape: f32[128,128], index: 3, kind: output, shape index: {}, may-alias: {0,3}]
  %s4 = sld [smem:[#allocation0]]
  $region22: #{_gcnffn_padded.5} parent=0
    _
  %s6 = ssub.s32 1, %s4
  %s7 = scalar_select 0, %s6, %s4
  // Predicated region
  $region2: #{_gcnffn_padded.5} parent=0 // pred_check
    _
  $region3: #{_gcnffn_padded.5} parent=0 // pred_check_branch
    %9 = sbr.rel (0) target = $region5
  $region4: #{_gcnffn_padded.5} parent=0 // pred_region
    _
  $region5: #{_gcnffn_padded.5} parent=0 // pred_fallthru
    _
  // Predicated region
  $region6: #{_gcnffn_padded.5} parent=0 // pred_check
    _
  $region7: #{_gcnffn_padded.5} parent=0 // pred_check_branch
    %11 = sbr.rel (0) target = $region9
  $region8: #{_gcnffn_padded.5} parent=0 // pred_region
    _
  $region9: #{_gcnffn_padded.5} parent=0 // pred_fallthru
    _
  // Predicated region
  $region10: #{_gcnffn_padded.5} parent=0 // pred_check
    _
  $region11: #{_gcnffn_padded.5} parent=0 // pred_check_branch
    %13 = sbr.rel (0) target = $region13
  $region12: #{_gcnffn_padded.5} parent=0 // pred_region
    _
  $region13: #{_gcnffn_padded.5} parent=0 // pred_fallthru
    _
  %v14 = vld [vmem:[%s0] sm:$0xff]
  %v15 = vld [vmem:[%s0 + $0x8] sm:$0xff]
  %v16 = vld [vmem:[%s0 + $0x10] sm:$0xff]
  %v17 = vld [vmem:[%s0 + $0x18] sm:$0xff]
  %v18 = vld [vmem:[%s0 + $0x20] sm:$0xff]
  %v19 = vld [vmem:[%s0 + $0x28] sm:$0xff]
  %v20 = vld [vmem:[%s0 + $0x30] sm:$0xff]
  %v21 = vld [vmem:[%s0 + $0x38] sm:$0xff]
  %v22 = vld [vmem:[%s0 + $0x40] sm:$0xff]
  %v23 = vld [vmem:[%s0 + $0x48] sm:$0xff]
  %v24 = vld [vmem:[%s0 + $0x50] sm:$0xff]
  %v25 = vld [vmem:[%s0 + $0x58] sm:$0xff]
  %v26 = vld [vmem:[%s0 + $0x60] sm:$0xff]
  %v27 = vld [vmem:[%s0 + $0x68] sm:$0xff]
  %v28 = vld [vmem:[%s0 + $0x70] sm:$0xff]
  %v29 = vld [vmem:[%s0 + $0x78] sm:$0xff]
  %v30 = vld [vmem:[%s1] sm:$0x1]
  %v32 = vlaneseq
  %v33 = vshrl.u32 %v32, 7
  %v34 = vsub.s32 0, %v33
  %v35 = vrot.slane %v30, %v34
  %v37 = vmul.f32 %v14, %v35
  %v38 = vmul.f32 %v15, %v35
  %v39 = vmul.f32 %v16, %v35
  %v40 = vmul.f32 %v17, %v35
  %v41 = vmul.f32 %v18, %v35
  %v42 = vmul.f32 %v19, %v35
  %v43 = vmul.f32 %v20, %v35
  %v44 = vmul.f32 %v21, %v35
  %v45 = vmul.f32 %v22, %v35
  %v46 = vmul.f32 %v23, %v35
  %v47 = vmul.f32 %v24, %v35
  %v48 = vmul.f32 %v25, %v35
  %v49 = vmul.f32 %v26, %v35
  %v50 = vmul.f32 %v27, %v35
  %v51 = vmul.f32 %v28, %v35
  %v52 = vmul.f32 %v29, %v35
  %v53 = vld [vmem:[%s2] sm:$0x1]
  %v55 = vlaneseq
  %v56 = vshrl.u32 %v55, 7
  %v57 = vsub.s32 0, %v56
  %v58 = vrot.slane %v53, %v57
  %v60 = vadd.f32 %v37, %v58
  %v61 = vadd.f32 %v38, %v58
  %v62 = vadd.f32 %v39, %v58
  %v63 = vadd.f32 %v40, %v58
  %v64 = vadd.f32 %v41, %v58
  %v65 = vadd.f32 %v42, %v58
  %v66 = vadd.f32 %v43, %v58
  %v67 = vadd.f32 %v44, %v58
  %v68 = vadd.f32 %v45, %v58
  %v69 = vadd.f32 %v46, %v58
  %v70 = vadd.f32 %v47, %v58
  %v71 = vadd.f32 %v48, %v58
  %v72 = vadd.f32 %v49, %v58
  %v73 = vadd.f32 %v50, %v58
  %v74 = vadd.f32 %v51, %v58
  %v75 = vadd.f32 %v52, %v58
  %v76 = vmul.f32 %v60, 0.5
  %v77 = vmul.f32 %v61, 0.5
  %v78 = vmul.f32 %v62, 0.5
  %v79 = vmul.f32 %v63, 0.5
  %v80 = vmul.f32 %v64, 0.5
  %v81 = vmul.f32 %v65, 0.5
  %v82 = vmul.f32 %v66, 0.5
  %v83 = vmul.f32 %v67, 0.5
  %v84 = vmul.f32 %v68, 0.5
  %v85 = vmul.f32 %v69, 0.5
  %v86 = vmul.f32 %v70, 0.5
  %v87 = vmul.f32 %v71, 0.5
  %v88 = vmul.f32 %v72, 0.5
  %v89 = vmul.f32 %v73, 0.5
  %v90 = vmul.f32 %v74, 0.5
  %v91 = vmul.f32 %v75, 0.5
  %v92 = vmul.f32 %v60, 0.70710677
  %v93 = vmul.f32 %v61, 0.70710677
  %v94 = vmul.f32 %v62, 0.70710677
  %v95 = vmul.f32 %v63, 0.70710677
  %v96 = vmul.f32 %v64, 0.70710677
  %v97 = vmul.f32 %v65, 0.70710677
  %v98 = vmul.f32 %v66, 0.70710677
  %v99 = vmul.f32 %v67, 0.70710677
  %v100 = vmul.f32 %v68, 0.70710677
  %v101 = vmul.f32 %v69, 0.70710677
  %v102 = vmul.f32 %v70, 0.70710677
  %v103 = vmul.f32 %v71, 0.70710677
  %v104 = vmul.f32 %v72, 0.70710677
  %v105 = vmul.f32 %v73, 0.70710677
  %v106 = vmul.f32 %v74, 0.70710677
  %v107 = vmul.f32 %v75, 0.70710677
  %v108 = verf.f32.pop %v92
  %v109 = verf.f32.pop %v93
  %v110 = verf.f32.pop %v94
  %v111 = verf.f32.pop %v95
  %v112 = verf.f32.pop %v96
  %v113 = verf.f32.pop %v97
  %v114 = verf.f32.pop %v98
  %v115 = verf.f32.pop %v99
  %v116 = verf.f32.pop %v100
  %v117 = verf.f32.pop %v101
  %v118 = verf.f32.pop %v102
  %v119 = verf.f32.pop %v103
  %v120 = verf.f32.pop %v104
  %v121 = verf.f32.pop %v105
  %v122 = verf.f32.pop %v106
  %v123 = verf.f32.pop %v107
  %v124 = vadd.f32 %v108, 1.0
  %v125 = vadd.f32 %v109, 1.0
  %v126 = vadd.f32 %v110, 1.0
  %v127 = vadd.f32 %v111, 1.0
  %v128 = vadd.f32 %v112, 1.0
  %v129 = vadd.f32 %v113, 1.0
  %v130 = vadd.f32 %v114, 1.0
  %v131 = vadd.f32 %v115, 1.0
  %v132 = vadd.f32 %v116, 1.0
  %v133 = vadd.f32 %v117, 1.0
  %v134 = vadd.f32 %v118, 1.0
  %v135 = vadd.f32 %v119, 1.0
  %v136 = vadd.f32 %v120, 1.0
  %v137 = vadd.f32 %v121, 1.0
  %v138 = vadd.f32 %v122, 1.0
  %v139 = vadd.f32 %v123, 1.0
  %v140 = vmul.f32 %v76, %v124
  %v141 = vmul.f32 %v77, %v125
  %v142 = vmul.f32 %v78, %v126
  %v143 = vmul.f32 %v79, %v127
  %v144 = vmul.f32 %v80, %v128
  %v145 = vmul.f32 %v81, %v129
  %v146 = vmul.f32 %v82, %v130
  %v147 = vmul.f32 %v83, %v131
  %v148 = vmul.f32 %v84, %v132
  %v149 = vmul.f32 %v85, %v133
  %v150 = vmul.f32 %v86, %v134
  %v151 = vmul.f32 %v87, %v135
  %v152 = vmul.f32 %v88, %v136
  %v153 = vmul.f32 %v89, %v137
  %v154 = vmul.f32 %v90, %v138
  %v155 = vmul.f32 %v91, %v139
  %156 = vst [vmem:[%s3] sm:$0xff] %v140
  %157 = vst [vmem:[%s3 + $0x8] sm:$0xff] %v141
  %158 = vst [vmem:[%s3 + $0x10] sm:$0xff] %v142
  %159 = vst [vmem:[%s3 + $0x18] sm:$0xff] %v143
  %160 = vst [vmem:[%s3 + $0x20] sm:$0xff] %v144
  %161 = vst [vmem:[%s3 + $0x28] sm:$0xff] %v145
  %162 = vst [vmem:[%s3 + $0x30] sm:$0xff] %v146
  %163 = vst [vmem:[%s3 + $0x38] sm:$0xff] %v147
  %164 = vst [vmem:[%s3 + $0x40] sm:$0xff] %v148
  %165 = vst [vmem:[%s3 + $0x48] sm:$0xff] %v149
  %166 = vst [vmem:[%s3 + $0x50] sm:$0xff] %v150
  %167 = vst [vmem:[%s3 + $0x58] sm:$0xff] %v151
  %168 = vst [vmem:[%s3 + $0x60] sm:$0xff] %v152
  %169 = vst [vmem:[%s3 + $0x68] sm:$0xff] %v153
  %170 = vst [vmem:[%s3 + $0x70] sm:$0xff] %v154
  %171 = vst [vmem:[%s3 + $0x78] sm:$0xff] %v155
  // Predicated region
  $region14: #{_gcnffn_padded.5} parent=0 // pred_check
    _
  $region15: #{_gcnffn_padded.5} parent=0 // pred_check_branch
    %173 = sbr.rel (0) target = $region17
  $region16: #{_gcnffn_padded.5} parent=0 // pred_region
    _
  $region17: #{_gcnffn_padded.5} parent=0 // pred_fallthru
    _
  // Predicated region
  $region18: #{_gcnffn_padded.5} parent=0 // pred_check
    _
  $region19: #{_gcnffn_padded.5} parent=0 // pred_check_branch
    %175 = sbr.rel (0) target = $region21
  $region20: #{_gcnffn_padded.5} parent=0 // pred_region
    _
  $region21: #{_gcnffn_padded.5} parent=0 // pred_fallthru
    _

// kernel: _gcnffn_padded.3
$region0: #{_gcnffn_padded.3}
  #allocation0 [shape = 'u32[]', space=smem, size = 0x4, offset = 0x4, fixed_abs, tag = 'smem constant byte address 0x4 - core index']
  #allocation1 [shape = 'u32[144,128]{1,0:T(1,128)}', space=vmem, size = 0x12000, scoped, tag = 'internal scratch']
  #allocation2 [shape = 'f32[128,128]{1,0:T(8,128)}', space=vmem, size = 0x10000, scoped, tag = 'scratch operand']
  #allocation3 [shape = 'f32[1,1]{1,0:T(1,128)S(6)}', space=smem, size = 0x200, scoped, tag = 'scoped memory for _gcnffn_padded.3']
  %s0 = inlined_call_operand.vmem [shape: s8[128,128], index: 0, kind: input, shape index: {}]
  %s1 = inlined_call_operand.vmem [shape: bf16[128,128], index: 1, kind: input, shape index: {}]
  %s2 = inlined_call_operand.vmem [shape: f32[128,128], index: 2, kind: input, shape index: {}]
  %s3 = inlined_call_operand.vmem [shape: f32[128,1], index: 3, kind: input, shape index: {}]
  %s4 = inlined_call_operand.vmem [shape: f32[128,128], index: 4, kind: input, shape index: {}]
  %s5 = inlined_call_operand.vmem [shape: f32[1,128], index: 5, kind: input, shape index: {}]
  %s6 = inlined_call_operand.<no memory space> [shape: f32[1,1], index: 6, kind: input, shape index: {}]
  %s7 = inlined_call_operand.vmem [shape: bf16[128,128], index: 7, kind: output, shape index: {0}]
  %s8 = inlined_call_operand.vmem [shape: bf16[128,128], index: 8, kind: output, shape index: {1}]
  %9 = xla_tuple %s7, %s8
  %s10 = sld [smem:[#allocation0]]
  $region54: #{_gcnffn_padded.3} parent=0
    _
  %s12 = ssub.s32 1, %s10
  %s13 = scalar_select 0, %s12, %s10
  %14 = sst [smem:[#allocation3]] %s6
  // Predicated region
  $region2: #{_gcnffn_padded.3} parent=0 // pred_check
    _
  $region3: #{_gcnffn_padded.3} parent=0 // pred_check_branch
    %16 = sbr.rel (0) target = $region5
  $region4: #{_gcnffn_padded.3} parent=0 // pred_region
    _
  $region5: #{_gcnffn_padded.3} parent=0 // pred_fallthru
    _
  // Predicated region
  $region6: #{_gcnffn_padded.3} parent=0 // pred_check
    _
  $region7: #{_gcnffn_padded.3} parent=0 // pred_check_branch
    %18 = sbr.rel (0) target = $region9
  $region8: #{_gcnffn_padded.3} parent=0 // pred_region
    _
  $region9: #{_gcnffn_padded.3} parent=0 // pred_fallthru
    _
  // Predicated region
  $region10: #{_gcnffn_padded.3} parent=0 // pred_check
    _
  $region11: #{_gcnffn_padded.3} parent=0 // pred_check_branch
    %20 = sbr.rel (0) target = $region13
  $region12: #{_gcnffn_padded.3} parent=0 // pred_region
    _
  $region13: #{_gcnffn_padded.3} parent=0 // pred_fallthru
    _
  // Predicated region
  $region14: #{_gcnffn_padded.3} parent=0 // pred_check
    _
  $region15: #{_gcnffn_padded.3} parent=0 // pred_check_branch
    %22 = sbr.rel (0) target = $region17
  $region16: #{_gcnffn_padded.3} parent=0 // pred_region
    _
  $region17: #{_gcnffn_padded.3} parent=0 // pred_fallthru
    _
  // Predicated region
  $region18: #{_gcnffn_padded.3} parent=0 // pred_check
    _
  $region19: #{_gcnffn_padded.3} parent=0 // pred_check_branch
    %24 = sbr.rel (0) target = $region21
  $region20: #{_gcnffn_padded.3} parent=0 // pred_region
    _
  $region21: #{_gcnffn_padded.3} parent=0 // pred_fallthru
    _
  // Predicated region
  $region22: #{_gcnffn_padded.3} parent=0 // pred_check
    _
  $region23: #{_gcnffn_padded.3} parent=0 // pred_check_branch
    %26 = sbr.rel (0) target = $region25
  $region24: #{_gcnffn_padded.3} parent=0 // pred_region
    _
  $region25: #{_gcnffn_padded.3} parent=0 // pred_fallthru
    _
  // Predicated region
  $region26: #{_gcnffn_padded.3} parent=0 // pred_check
    _
  $region27: #{_gcnffn_padded.3} parent=0 // pred_check_branch
    %28 = sbr.rel (0) target = $region29
  $region28: #{_gcnffn_padded.3} parent=0 // pred_region
    _
  $region29: #{_gcnffn_padded.3} parent=0 // pred_fallthru
    _
  %p30 = scmp.eq.s32.totalorder 0, 0
  // Predicated region
  $region30: #{_gcnffn_padded.3} parent=0 // pred_check
    %p31 = pneg %p30
  $region31: #{_gcnffn_padded.3} parent=0 // pred_check_branch
    %33 = sbr.rel (%p31) target = $region33
  $region32: #{_gcnffn_padded.3} parent=0 // pred_region
    %34 = vst [vmem:[#allocation2] sm:$0xff] 0.0
    %35 = vst [vmem:[#allocation2 + $0x8] sm:$0xff] 0.0
    %36 = vst [vmem:[#allocation2 + $0x10] sm:$0xff] 0.0
    %37 = vst [vmem:[#allocation2 + $0x18] sm:$0xff] 0.0
    %38 = vst [vmem:[#allocation2 + $0x20] sm:$0xff] 0.0
    %39 = vst [vmem:[#allocation2 + $0x28] sm:$0xff] 0.0
    %40 = vst [vmem:[#allocation2 + $0x30] sm:$0xff] 0.0
    %41 = vst [vmem:[#allocation2 + $0x38] sm:$0xff] 0.0
    %42 = vst [vmem:[#allocation2 + $0x40] sm:$0xff] 0.0
    %43 = vst [vmem:[#allocation2 + $0x48] sm:$0xff] 0.0
    %44 = vst [vmem:[#allocation2 + $0x50] sm:$0xff] 0.0
    %45 = vst [vmem:[#allocation2 + $0x58] sm:$0xff] 0.0
    %46 = vst [vmem:[#allocation2 + $0x60] sm:$0xff] 0.0
    %47 = vst [vmem:[#allocation2 + $0x68] sm:$0xff] 0.0
    %48 = vst [vmem:[#allocation2 + $0x70] sm:$0xff] 0.0
    %49 = vst [vmem:[#allocation2 + $0x78] sm:$0xff] 0.0
  $region33: #{_gcnffn_padded.3} parent=0 // pred_fallthru
    _
  %s50 = smul.u32 0, 128
  %s51 = sshra.s32 %s50, 3
  %s52 = sand.u32 %s50, 7
  %s53 = smul.addr %s51, 4
  %s54 = scalar_lea.vmem %s1, %s53
  %v55 = vld [vmem:[%s54] sm:$0xf]
  %v56 = vld [vmem:[%s54 + $0x4] sm:$0xf]
  %v57 = vld [vmem:[%s54 + $0x8] sm:$0xf]
  %v58 = vld [vmem:[%s54 + $0xc] sm:$0xf]
  %v59 = vld [vmem:[%s54 + $0x10] sm:$0xf]
  %v60 = vld [vmem:[%s54 + $0x14] sm:$0xf]
  %v61 = vld [vmem:[%s54 + $0x18] sm:$0xf]
  %v62 = vld [vmem:[%s54 + $0x1c] sm:$0xf]
  %v63 = vld [vmem:[%s54 + $0x20] sm:$0xf]
  %v64 = vld [vmem:[%s54 + $0x24] sm:$0xf]
  %v65 = vld [vmem:[%s54 + $0x28] sm:$0xf]
  %v66 = vld [vmem:[%s54 + $0x2c] sm:$0xf]
  %v67 = vld [vmem:[%s54 + $0x30] sm:$0xf]
  %v68 = vld [vmem:[%s54 + $0x34] sm:$0xf]
  %v69 = vld [vmem:[%s54 + $0x38] sm:$0xf]
  %v70 = vld [vmem:[%s54 + $0x3c] sm:$0xf]
  %v71 = vld [vmem:[#allocation2] sm:$0xff]
  %v72 = vld [vmem:[#allocation2 + $0x8] sm:$0xff]
  %v73 = vld [vmem:[#allocation2 + $0x10] sm:$0xff]
  %v74 = vld [vmem:[#allocation2 + $0x18] sm:$0xff]
  %v75 = vld [vmem:[#allocation2 + $0x20] sm:$0xff]
  %v76 = vld [vmem:[#allocation2 + $0x28] sm:$0xff]
  %v77 = vld [vmem:[#allocation2 + $0x30] sm:$0xff]
  %v78 = vld [vmem:[#allocation2 + $0x38] sm:$0xff]
  %v79 = vld [vmem:[#allocation2 + $0x40] sm:$0xff]
  %v80 = vld [vmem:[#allocation2 + $0x48] sm:$0xff]
  %v81 = vld [vmem:[#allocation2 + $0x50] sm:$0xff]
  %v82 = vld [vmem:[#allocation2 + $0x58] sm:$0xff]
  %v83 = vld [vmem:[#allocation2 + $0x60] sm:$0xff]
  %v84 = vld [vmem:[#allocation2 + $0x68] sm:$0xff]
  %v85 = vld [vmem:[#allocation2 + $0x70] sm:$0xff]
  %v86 = vld [vmem:[#allocation2 + $0x78] sm:$0xff]
  %v87 = vld [vmem:[%s0] sm:$0xff]
  %v88 = vld [vmem:[%s0 + $0x8] sm:$0xff]
  %v89 = vld [vmem:[%s0 + $0x10] sm:$0xff]
  %v90 = vld [vmem:[%s0 + $0x18] sm:$0xff]
  %v91 = vunpack.c.l.s8.bf16 %v87
  %v92 = vunpack.c.h.s8.bf16 %v87
  %v93 = vunpack.c.l.s8.bf16 %v88
  %v94 = vunpack.c.h.s8.bf16 %v88
  %v95 = vunpack.c.l.s8.bf16 %v89
  %v96 = vunpack.c.h.s8.bf16 %v89
  %v97 = vunpack.c.l.s8.bf16 %v90
  %v98 = vunpack.c.h.s8.bf16 %v90
  %v115 = vunpack.c.l.b16 %v55
  %v116 = vunpack.c.l.b16 %v56
  %v117 = vunpack.c.l.b16 %v57
  %v118 = vunpack.c.l.b16 %v58
  %v119 = vunpack.c.l.b16 %v59
  %v120 = vunpack.c.l.b16 %v60
  %v121 = vunpack.c.l.b16 %v61
  %v122 = vunpack.c.l.b16 %v62
  %v123 = vunpack.c.l.b16 %v63
  %v124 = vunpack.c.l.b16 %v64
  %v125 = vunpack.c.l.b16 %v65
  %v126 = vunpack.c.l.b16 %v66
  %v127 = vunpack.c.l.b16 %v67
  %v128 = vunpack.c.l.b16 %v68
  %v129 = vunpack.c.l.b16 %v69
  %v130 = vunpack.c.l.b16 %v70
  %v131 = vpack.c.b16 %v116, %v115
  %v132 = vpack.c.b16 %v118, %v117
  %v133 = vpack.c.b16 %v120, %v119
  %v134 = vpack.c.b16 %v122, %v121
  %v135 = vpack.c.b16 %v124, %v123
  %v136 = vpack.c.b16 %v126, %v125
  %v137 = vpack.c.b16 %v128, %v127
  %v138 = vpack.c.b16 %v130, %v129
  %147 = vmatprep.subr.bf16.mxu0 0
  %148 = vmatpush1.bf16.msra.mxu0 %v131
  %149 = vmatprep.subr.bf16.mxu0 0
  %150 = vmatpush1.bf16.msra.mxu0 %v132
  %151 = vmatprep.subr.bf16.mxu0 0
  %152 = vmatpush1.bf16.msra.mxu0 %v133
  %153 = vmatprep.subr.bf16.mxu0 0
  %154 = vmatpush1.bf16.msra.mxu0 %v134
  %155 = vmatprep.subr.bf16.mxu0 0
  %156 = vmatpush1.bf16.msra.mxu0 %v135
  %157 = vmatprep.subr.bf16.mxu0 0
  %158 = vmatpush1.bf16.msra.mxu0 %v136
  %159 = vmatprep.subr.bf16.mxu0 0
  %160 = vmatpush1.bf16.msra.mxu0 %v137
  %161 = vmatprep.subr.bf16.mxu0 0
  %162 = vmatpush1.bf16.msra.mxu0 %v138
  %163 = vmatprep.subr.bf16.mxu0 0
  %164 = vmatpush1.bf16.msra.mxu0 0
  %165 = vmatprep.subr.bf16.mxu0 0
  %166 = vmatpush1.bf16.msra.mxu0 0
  %167 = vmatprep.subr.bf16.mxu0 0
  %168 = vmatpush1.bf16.msra.mxu0 0
  %169 = vmatprep.subr.bf16.mxu0 0
  %170 = vmatpush1.bf16.msra.mxu0 0
  %171 = vmatprep.subr.bf16.mxu0 0
  %172 = vmatpush1.bf16.msra.mxu0 0
  %173 = vmatprep.subr.bf16.mxu0 0
  %174 = vmatpush1.bf16.msra.mxu0 0
  %175 = vmatprep.subr.bf16.mxu0 0
  %176 = vmatpush1.bf16.msra.mxu0 0
  %177 = vmatprep.subr.bf16.mxu0 0
  %178 = vmatpush1.bf16.msra.mxu0 0
  %179 = vmatprep.mubr.bf16.mxu0 0
  %180 = vmatmul.mubr.bf16.gmra.mrb[0].mxu0 %v91
  %v181 = vpop.f32.mrb[0].mxu0
  %v182 = vadd.f32 0.0, %v181
  %v183 = vpop.f32.mrb[0].mxu0
  %v184 = vpop.f32.mrb[0].mxu0
  %v185 = vadd.f32 0.0, %v184
  %v186 = vpop.f32.mrb[0].mxu0
  %187 = vmatprep.mubr.bf16.mxu0 0
  %188 = vmatmul.mubr.bf16.gmra.mrb[0].mxu0 %v92
  %v189 = vpop.f32.mrb[0].mxu0
  %v190 = vadd.f32 0.0, %v189
  %v191 = vpop.f32.mrb[0].mxu0
  %v192 = vpop.f32.mrb[0].mxu0
  %v193 = vadd.f32 0.0, %v192
  %v194 = vpop.f32.mrb[0].mxu0
  %195 = vmatprep.mubr.bf16.mxu0 0
  %196 = vmatmul.mubr.bf16.gmra.mrb[0].mxu0 %v93
  %v197 = vpop.f32.mrb[0].mxu0
  %v198 = vadd.f32 0.0, %v197
  %v199 = vpop.f32.mrb[0].mxu0
  %v200 = vpop.f32.mrb[0].mxu0
  %v201 = vadd.f32 0.0, %v200
  %v202 = vpop.f32.mrb[0].mxu0
  %203 = vmatprep.mubr.bf16.mxu0 0
  %204 = vmatmul.mubr.bf16.gmra.mrb[0].mxu0 %v94
  %v205 = vpop.f32.mrb[0].mxu0
  %v206 = vadd.f32 0.0, %v205
  %v207 = vpop.f32.mrb[0].mxu0
  %v208 = vpop.f32.mrb[0].mxu0
  %v209 = vadd.f32 0.0, %v208
  %v210 = vpop.f32.mrb[0].mxu0
  %211 = vmatprep.mubr.bf16.mxu0 0
  %212 = vmatmul.mubr.bf16.gmra.mrb[0].mxu0 %v95
  %v213 = vpop.f32.mrb[0].mxu0
  %v214 = vadd.f32 0.0, %v213
  %v215 = vpop.f32.mrb[0].mxu0
  %v216 = vpop.f32.mrb[0].mxu0
  %v217 = vadd.f32 0.0, %v216
  %v218 = vpop.f32.mrb[0].mxu0
  %219 = vmatprep.mubr.bf16.mxu0 0
  %220 = vmatmul.mubr.bf16.gmra.mrb[0].mxu0 %v96
  %v221 = vpop.f32.mrb[0].mxu0
  %v222 = vadd.f32 0.0, %v221
  %v223 = vpop.f32.mrb[0].mxu0
  %v224 = vpop.f32.mrb[0].mxu0
  %v225 = vadd.f32 0.0, %v224
  %v226 = vpop.f32.mrb[0].mxu0
  %227 = vmatprep.mubr.bf16.mxu0 0
  %228 = vmatmul.mubr.bf16.gmra.mrb[0].mxu0 %v97
  %v229 = vpop.f32.mrb[0].mxu0
  %v230 = vadd.f32 0.0, %v229
  %v231 = vpop.f32.mrb[0].mxu0
  %v232 = vpop.f32.mrb[0].mxu0
  %v233 = vadd.f32 0.0, %v232
  %v234 = vpop.f32.mrb[0].mxu0
  %235 = vmatprep.mubr.bf16.mxu0 0
  %236 = vmatmul.mubr.bf16.gmra.mrb[0].mxu0 %v98
  %v237 = vpop.f32.mrb[0].mxu0
  %v238 = vadd.f32 0.0, %v237
  %v239 = vpop.f32.mrb[0].mxu0
  %v240 = vpop.f32.mrb[0].mxu0
  %v241 = vadd.f32 0.0, %v240
  %v242 = vpop.f32.mrb[0].mxu0
  %243 = vdwg.mxu0
  %v244 = vadd.f32 %v71, %v182
  %v245 = vadd.f32 %v72, %v185
  %v246 = vadd.f32 %v73, %v190
  %v247 = vadd.f32 %v74, %v193
  %v248 = vadd.f32 %v75, %v198
  %v249 = vadd.f32 %v76, %v201
  %v250 = vadd.f32 %v77, %v206
  %v251 = vadd.f32 %v78, %v209
  %v252 = vadd.f32 %v79, %v214
  %v253 = vadd.f32 %v80, %v217
  %v254 = vadd.f32 %v81, %v222
  %v255 = vadd.f32 %v82, %v225
  %v256 = vadd.f32 %v83, %v230
  %v257 = vadd.f32 %v84, %v233
  %v258 = vadd.f32 %v85, %v238
  %v259 = vadd.f32 %v86, %v241
  %260 = vst [vmem:[#allocation2] sm:$0xff] %v244
  %261 = vst [vmem:[#allocation2 + $0x8] sm:$0xff] %v245
  %262 = vst [vmem:[#allocation2 + $0x10] sm:$0xff] %v246
  %263 = vst [vmem:[#allocation2 + $0x18] sm:$0xff] %v247
  %264 = vst [vmem:[#allocation2 + $0x20] sm:$0xff] %v248
  %265 = vst [vmem:[#allocation2 + $0x28] sm:$0xff] %v249
  %266 = vst [vmem:[#allocation2 + $0x30] sm:$0xff] %v250
  %267 = vst [vmem:[#allocation2 + $0x38] sm:$0xff] %v251
  %268 = vst [vmem:[#allocation2 + $0x40] sm:$0xff] %v252
  %269 = vst [vmem:[#allocation2 + $0x48] sm:$0xff] %v253
  %270 = vst [vmem:[#allocation2 + $0x50] sm:$0xff] %v254
  %271 = vst [vmem:[#allocation2 + $0x58] sm:$0xff] %v255
  %272 = vst [vmem:[#allocation2 + $0x60] sm:$0xff] %v256
  %273 = vst [vmem:[#allocation2 + $0x68] sm:$0xff] %v257
  %274 = vst [vmem:[#allocation2 + $0x70] sm:$0xff] %v258
  %275 = vst [vmem:[#allocation2 + $0x78] sm:$0xff] %v259
  // Predicated region
  $region34: #{_gcnffn_padded.3} parent=0 // pred_check
    %p276 = pneg %p30
  $region35: #{_gcnffn_padded.3} parent=0 // pred_check_branch
    %278 = sbr.rel (%p276) target = $region37
  $region36: #{_gcnffn_padded.3} parent=0 // pred_region
    %v279 = vld [vmem:[%s3] sm:$0xff]
    %v280 = vld [vmem:[%s3 + $0x8] sm:$0xff]
    %v281 = vld [vmem:[%s3 + $0x10] sm:$0xff]
    %v282 = vld [vmem:[%s3 + $0x18] sm:$0xff]
    %v283 = vld [vmem:[%s3 + $0x20] sm:$0xff]
    %v284 = vld [vmem:[%s3 + $0x28] sm:$0xff]
    %v285 = vld [vmem:[%s3 + $0x30] sm:$0xff]
    %v286 = vld [vmem:[%s3 + $0x38] sm:$0xff]
    %v287 = vld [vmem:[%s3 + $0x40] sm:$0xff]
    %v288 = vld [vmem:[%s3 + $0x48] sm:$0xff]
    %v289 = vld [vmem:[%s3 + $0x50] sm:$0xff]
    %v290 = vld [vmem:[%s3 + $0x58] sm:$0xff]
    %v291 = vld [vmem:[%s3 + $0x60] sm:$0xff]
    %v292 = vld [vmem:[%s3 + $0x68] sm:$0xff]
    %v293 = vld [vmem:[%s3 + $0x70] sm:$0xff]
    %v294 = vld [vmem:[%s3 + $0x78] sm:$0xff]
    %v295 = vld [vmem:[#allocation2] sm:$0xff]
    %v296 = vld [vmem:[#allocation2 + $0x8] sm:$0xff]
    %v297 = vld [vmem:[#allocation2 + $0x10] sm:$0xff]
    %v298 = vld [vmem:[#allocation2 + $0x18] sm:$0xff]
    %v299 = vld [vmem:[#allocation2 + $0x20] sm:$0xff]
    %v300 = vld [vmem:[#allocation2 + $0x28] sm:$0xff]
    %v301 = vld [vmem:[#allocation2 + $0x30] sm:$0xff]
    %v302 = vld [vmem:[#allocation2 + $0x38] sm:$0xff]
    %v303 = vld [vmem:[#allocation2 + $0x40] sm:$0xff]
    %v304 = vld [vmem:[#allocation2 + $0x48] sm:$0xff]
    %v305 = vld [vmem:[#allocation2 + $0x50] sm:$0xff]
    %v306 = vld [vmem:[#allocation2 + $0x58] sm:$0xff]
    %v307 = vld [vmem:[#allocation2 + $0x60] sm:$0xff]
    %v308 = vld [vmem:[#allocation2 + $0x68] sm:$0xff]
    %v309 = vld [vmem:[#allocation2 + $0x70] sm:$0xff]
    %v310 = vld [vmem:[#allocation2 + $0x78] sm:$0xff]
    %312 = vset.pattern.permute.xlu0 0
    %313 = vperm.xlu0 %312, %v279
    %v314 = vpop.permute.xlu0 %313
    %317 = vset.pattern.permute.xlu0 0
    %318 = vperm.xlu0 %317, %v280
    %v319 = vpop.permute.xlu0 %318
    %322 = vset.pattern.permute.xlu0 0
    %323 = vperm.xlu0 %322, %v281
    %v324 = vpop.permute.xlu0 %323
    %327 = vset.pattern.permute.xlu0 0
    %328 = vperm.xlu0 %327, %v282
    %v329 = vpop.permute.xlu0 %328
    %332 = vset.pattern.permute.xlu0 0
    %333 = vperm.xlu0 %332, %v283
    %v334 = vpop.permute.xlu0 %333
    %337 = vset.pattern.permute.xlu0 0
    %338 = vperm.xlu0 %337, %v284
    %v339 = vpop.permute.xlu0 %338
    %342 = vset.pattern.permute.xlu0 0
    %343 = vperm.xlu0 %342, %v285
    %v344 = vpop.permute.xlu0 %343
    %347 = vset.pattern.permute.xlu0 0
    %348 = vperm.xlu0 %347, %v286
    %v349 = vpop.permute.xlu0 %348
    %352 = vset.pattern.permute.xlu0 0
    %353 = vperm.xlu0 %352, %v287
    %v354 = vpop.permute.xlu0 %353
    %357 = vset.pattern.permute.xlu0 0
    %358 = vperm.xlu0 %357, %v288
    %v359 = vpop.permute.xlu0 %358
    %362 = vset.pattern.permute.xlu0 0
    %363 = vperm.xlu0 %362, %v289
    %v364 = vpop.permute.xlu0 %363
    %367 = vset.pattern.permute.xlu0 0
    %368 = vperm.xlu0 %367, %v290
    %v369 = vpop.permute.xlu0 %368
    %372 = vset.pattern.permute.xlu0 0
    %373 = vperm.xlu0 %372, %v291
    %v374 = vpop.permute.xlu0 %373
    %377 = vset.pattern.permute.xlu0 0
    %378 = vperm.xlu0 %377, %v292
    %v379 = vpop.permute.xlu0 %378
    %382 = vset.pattern.permute.xlu0 0
    %383 = vperm.xlu0 %382, %v293
    %v384 = vpop.permute.xlu0 %383
    %387 = vset.pattern.permute.xlu0 0
    %388 = vperm.xlu0 %387, %v294
    %v389 = vpop.permute.xlu0 %388
    %v391 = vmul.f32 %v295, %v314
    %v392 = vmul.f32 %v296, %v319
    %v393 = vmul.f32 %v297, %v324
    %v394 = vmul.f32 %v298, %v329
    %v395 = vmul.f32 %v299, %v334
    %v396 = vmul.f32 %v300, %v339
    %v397 = vmul.f32 %v301, %v344
    %v398 = vmul.f32 %v302, %v349
    %v399 = vmul.f32 %v303, %v354
    %v400 = vmul.f32 %v304, %v359
    %v401 = vmul.f32 %v305, %v364
    %v402 = vmul.f32 %v306, %v369
    %v403 = vmul.f32 %v307, %v374
    %v404 = vmul.f32 %v308, %v379
    %v405 = vmul.f32 %v309, %v384
    %v406 = vmul.f32 %v310, %v389
    %v407 = vld [vmem:[%s4] sm:$0xff]
    %v408 = vld [vmem:[%s4 + $0x8] sm:$0xff]
    %v409 = vld [vmem:[%s4 + $0x10] sm:$0xff]
    %v410 = vld [vmem:[%s4 + $0x18] sm:$0xff]
    %v411 = vld [vmem:[%s4 + $0x20] sm:$0xff]
    %v412 = vld [vmem:[%s4 + $0x28] sm:$0xff]
    %v413 = vld [vmem:[%s4 + $0x30] sm:$0xff]
    %v414 = vld [vmem:[%s4 + $0x38] sm:$0xff]
    %v415 = vld [vmem:[%s4 + $0x40] sm:$0xff]
    %v416 = vld [vmem:[%s4 + $0x48] sm:$0xff]
    %v417 = vld [vmem:[%s4 + $0x50] sm:$0xff]
    %v418 = vld [vmem:[%s4 + $0x58] sm:$0xff]
    %v419 = vld [vmem:[%s4 + $0x60] sm:$0xff]
    %v420 = vld [vmem:[%s4 + $0x68] sm:$0xff]
    %v421 = vld [vmem:[%s4 + $0x70] sm:$0xff]
    %v422 = vld [vmem:[%s4 + $0x78] sm:$0xff]
    %v423 = vld [vmem:[%s5] sm:$0x1]
    %v425 = vlaneseq
    %v426 = vshrl.u32 %v425, 7
    %v427 = vsub.s32 0, %v426
    %v428 = vrot.slane %v423, %v427
    %430 = vmatprep.subr.mxu0 0.0
    %431 = vmatpush1.msra.mxu0 %v407
    %432 = vmatprep.subr.mxu0 0.0
    %433 = vmatpush1.msra.mxu0 %v408
    %434 = vmatprep.subr.mxu0 0.0
    %435 = vmatpush1.msra.mxu0 %v409
    %436 = vmatprep.subr.mxu0 0.0
    %437 = vmatpush1.msra.mxu0 %v410
    %438 = vmatprep.subr.mxu0 0.0
    %439 = vmatpush1.msra.mxu0 %v411
    %440 = vmatprep.subr.mxu0 0.0
    %441 = vmatpush1.msra.mxu0 %v412
    %442 = vmatprep.subr.mxu0 0.0
    %443 = vmatpush1.msra.mxu0 %v413
    %444 = vmatprep.subr.mxu0 0.0
    %445 = vmatpush1.msra.mxu0 %v414
    %446 = vmatprep.subr.mxu0 0.0
    %447 = vmatpush1.msra.mxu0 %v415
    %448 = vmatprep.subr.mxu0 0.0
    %449 = vmatpush1.msra.mxu0 %v416
    %450 = vmatprep.subr.mxu0 0.0
    %451 = vmatpush1.msra.mxu0 %v417
    %452 = vmatprep.subr.mxu0 0.0
    %453 = vmatpush1.msra.mxu0 %v418
    %454 = vmatprep.subr.mxu0 0.0
    %455 = vmatpush1.msra.mxu0 %v419
    %456 = vmatprep.subr.mxu0 0.0
    %457 = vmatpush1.msra.mxu0 %v420
    %458 = vmatprep.subr.mxu0 0.0
    %459 = vmatpush1.msra.mxu0 %v421
    %460 = vmatprep.subr.mxu0 0.0
    %461 = vmatpush1.msra.mxu0 %v422
    %462 = vmatprep.subr.mxu0 0.0
    %463 = vmatpush1.msra.mxu0 0.0
    %464 = vmatprep.subr.mxu0 0.0
    %465 = vmatpush1.msra.mxu0 0.0
    %466 = vmatprep.subr.mxu0 0.0
    %467 = vmatpush1.msra.mxu0 0.0
    %468 = vmatprep.subr.mxu0 0.0
    %469 = vmatpush1.msra.mxu0 0.0
    %470 = vmatprep.subr.mxu0 0.0
    %471 = vmatpush1.msra.mxu0 0.0
    %472 = vmatprep.subr.mxu0 0.0
    %473 = vmatpush1.msra.mxu0 0.0
    %474 = vmatprep.subr.mxu0 0.0
    %475 = vmatpush1.msra.mxu0 0.0
    %476 = vmatprep.subr.mxu0 0.0
    %477 = vmatpush1.msra.mxu0 0.0
    %478 = vmatprep.subr.mxu0 0.0
    %479 = vmatpush1.msra.mxu0 0.0
    %480 = vmatprep.subr.mxu0 0.0
    %481 = vmatpush1.msra.mxu0 0.0
    %482 = vmatprep.subr.mxu0 0.0
    %483 = vmatpush1.msra.mxu0 0.0
    %484 = vmatprep.subr.mxu0 0.0
    %485 = vmatpush1.msra.mxu0 0.0
    %486 = vmatprep.subr.mxu0 0.0
    %487 = vmatpush1.msra.mxu0 0.0
    %488 = vmatprep.subr.mxu0 0.0
    %489 = vmatpush1.msra.mxu0 0.0
    %490 = vmatprep.subr.mxu0 0.0
    %491 = vmatpush1.msra.mxu0 0.0
    %492 = vmatprep.subr.mxu0 0.0
    %493 = vmatpush1.msra.mxu0 0.0
    %494 = vmatprep.mubr.f32.mxu0 0.0
    %495 = vmatmul.mubr.f32.gmra.mrb[0].mxu0 %v391
    %v496 = vpop.f32.mrb[0].mxu0
    %v497 = vadd.f32 %v428, %v496
    %v498 = vpop.f32.mrb[0].mxu0
    %499 = vmatprep.mubr.f32.mxu0 0.0
    %500 = vmatmul.mubr.f32.gmra.mrb[0].mxu0 %v392
    %v501 = vpop.f32.mrb[0].mxu0
    %v502 = vadd.f32 %v428, %v501
    %v503 = vpop.f32.mrb[0].mxu0
    %504 = vmatprep.mubr.f32.mxu0 0.0
    %505 = vmatmul.mubr.f32.gmra.mrb[0].mxu0 %v393
    %v506 = vpop.f32.mrb[0].mxu0
    %v507 = vadd.f32 %v428, %v506
    %v508 = vpop.f32.mrb[0].mxu0
    %509 = vmatprep.mubr.f32.mxu0 0.0
    %510 = vmatmul.mubr.f32.gmra.mrb[0].mxu0 %v394
    %v511 = vpop.f32.mrb[0].mxu0
    %v512 = vadd.f32 %v428, %v511
    %v513 = vpop.f32.mrb[0].mxu0
    %514 = vmatprep.mubr.f32.mxu0 0.0
    %515 = vmatmul.mubr.f32.gmra.mrb[0].mxu0 %v395
    %v516 = vpop.f32.mrb[0].mxu0
    %v517 = vadd.f32 %v428, %v516
    %v518 = vpop.f32.mrb[0].mxu0
    %519 = vmatprep.mubr.f32.mxu0 0.0
    %520 = vmatmul.mubr.f32.gmra.mrb[0].mxu0 %v396
    %v521 = vpop.f32.mrb[0].mxu0
    %v522 = vadd.f32 %v428, %v521
    %v523 = vpop.f32.mrb[0].mxu0
    %524 = vmatprep.mubr.f32.mxu0 0.0
    %525 = vmatmul.mubr.f32.gmra.mrb[0].mxu0 %v397
    %v526 = vpop.f32.mrb[0].mxu0
    %v527 = vadd.f32 %v428, %v526
    %v528 = vpop.f32.mrb[0].mxu0
    %529 = vmatprep.mubr.f32.mxu0 0.0
    %530 = vmatmul.mubr.f32.gmra.mrb[0].mxu0 %v398
    %v531 = vpop.f32.mrb[0].mxu0
    %v532 = vadd.f32 %v428, %v531
    %v533 = vpop.f32.mrb[0].mxu0
    %534 = vmatprep.mubr.f32.mxu0 0.0
    %535 = vmatmul.mubr.f32.gmra.mrb[0].mxu0 %v399
    %v536 = vpop.f32.mrb[0].mxu0
    %v537 = vadd.f32 %v428, %v536
    %v538 = vpop.f32.mrb[0].mxu0
    %539 = vmatprep.mubr.f32.mxu0 0.0
    %540 = vmatmul.mubr.f32.gmra.mrb[0].mxu0 %v400
    %v541 = vpop.f32.mrb[0].mxu0
    %v542 = vadd.f32 %v428, %v541
    %v543 = vpop.f32.mrb[0].mxu0
    %544 = vmatprep.mubr.f32.mxu0 0.0
    %545 = vmatmul.mubr.f32.gmra.mrb[0].mxu0 %v401
    %v546 = vpop.f32.mrb[0].mxu0
    %v547 = vadd.f32 %v428, %v546
    %v548 = vpop.f32.mrb[0].mxu0
    %549 = vmatprep.mubr.f32.mxu0 0.0
    %550 = vmatmul.mubr.f32.gmra.mrb[0].mxu0 %v402
    %v551 = vpop.f32.mrb[0].mxu0
    %v552 = vadd.f32 %v428, %v551
    %v553 = vpop.f32.mrb[0].mxu0
    %554 = vmatprep.mubr.f32.mxu0 0.0
    %555 = vmatmul.mubr.f32.gmra.mrb[0].mxu0 %v403
    %v556 = vpop.f32.mrb[0].mxu0
    %v557 = vadd.f32 %v428, %v556
    %v558 = vpop.f32.mrb[0].mxu0
    %559 = vmatprep.mubr.f32.mxu0 0.0
    %560 = vmatmul.mubr.f32.gmra.mrb[0].mxu0 %v404
    %v561 = vpop.f32.mrb[0].mxu0
    %v562 = vadd.f32 %v428, %v561
    %v563 = vpop.f32.mrb[0].mxu0
    %564 = vmatprep.mubr.f32.mxu0 0.0
    %565 = vmatmul.mubr.f32.gmra.mrb[0].mxu0 %v405
    %v566 = vpop.f32.mrb[0].mxu0
    %v567 = vadd.f32 %v428, %v566
    %v568 = vpop.f32.mrb[0].mxu0
    %569 = vmatprep.mubr.f32.mxu0 0.0
    %570 = vmatmul.mubr.f32.gmra.mrb[0].mxu0 %v406
    %v571 = vpop.f32.mrb[0].mxu0
    %v572 = vadd.f32 %v428, %v571
    %v573 = vpop.f32.mrb[0].mxu0
    %574 = vdwg.mxu0
    %v575 = vmul.f32 %v497, %v497
    %v576 = vmul.f32 %v502, %v502
    %v577 = vmul.f32 %v507, %v507
    %v578 = vmul.f32 %v512, %v512
    %v579 = vmul.f32 %v517, %v517
    %v580 = vmul.f32 %v522, %v522
    %v581 = vmul.f32 %v527, %v527
    %v582 = vmul.f32 %v532, %v532
    %v583 = vmul.f32 %v537, %v537
    %v584 = vmul.f32 %v542, %v542
    %v585 = vmul.f32 %v547, %v547
    %v586 = vmul.f32 %v552, %v552
    %v587 = vmul.f32 %v557, %v557
    %v588 = vmul.f32 %v562, %v562
    %v589 = vmul.f32 %v567, %v567
    %v590 = vmul.f32 %v572, %v572
    %591 = vadd.xlane.f32.xlu0 %v575
    %v592 = vpop.xlane.xlu0 %591
    %593 = vadd.xlane.f32.xlu0 %v576
    %v594 = vpop.xlane.xlu0 %593
    %595 = vadd.xlane.f32.xlu0 %v577
    %v596 = vpop.xlane.xlu0 %595
    %597 = vadd.xlane.f32.xlu0 %v578
    %v598 = vpop.xlane.xlu0 %597
    %599 = vadd.xlane.f32.xlu0 %v579
    %v600 = vpop.xlane.xlu0 %599
    %601 = vadd.xlane.f32.xlu0 %v580
    %v602 = vpop.xlane.xlu0 %601
    %603 = vadd.xlane.f32.xlu0 %v581
    %v604 = vpop.xlane.xlu0 %603
    %605 = vadd.xlane.f32.xlu0 %v582
    %v606 = vpop.xlane.xlu0 %605
    %607 = vadd.xlane.f32.xlu0 %v583
    %v608 = vpop.xlane.xlu0 %607
    %609 = vadd.xlane.f32.xlu0 %v584
    %v610 = vpop.xlane.xlu0 %609
    %611 = vadd.xlane.f32.xlu0 %v585
    %v612 = vpop.xlane.xlu0 %611
    %613 = vadd.xlane.f32.xlu0 %v586
    %v614 = vpop.xlane.xlu0 %613
    %615 = vadd.xlane.f32.xlu0 %v587
    %v616 = vpop.xlane.xlu0 %615
    %617 = vadd.xlane.f32.xlu0 %v588
    %v618 = vpop.xlane.xlu0 %617
    %619 = vadd.xlane.f32.xlu0 %v589
    %v620 = vpop.xlane.xlu0 %619
    %621 = vadd.xlane.f32.xlu0 %v590
    %v622 = vpop.xlane.xlu0 %621
    %v623 = vmax.f32 %v592, 1e-24
    %v624 = vmax.f32 %v594, 1e-24
    %v625 = vmax.f32 %v596, 1e-24
    %v626 = vmax.f32 %v598, 1e-24
    %v627 = vmax.f32 %v600, 1e-24
    %v628 = vmax.f32 %v602, 1e-24
    %v629 = vmax.f32 %v604, 1e-24
    %v630 = vmax.f32 %v606, 1e-24
    %v631 = vmax.f32 %v608, 1e-24
    %v632 = vmax.f32 %v610, 1e-24
    %v633 = vmax.f32 %v612, 1e-24
    %v634 = vmax.f32 %v614, 1e-24
    %v635 = vmax.f32 %v616, 1e-24
    %v636 = vmax.f32 %v618, 1e-24
    %v637 = vmax.f32 %v620, 1e-24
    %v638 = vmax.f32 %v622, 1e-24
    %v639 = vrsqrt.pop %v623
    %v640 = vrsqrt.pop %v624
    %v641 = vrsqrt.pop %v625
    %v642 = vrsqrt.pop %v626
    %v643 = vrsqrt.pop %v627
    %v644 = vrsqrt.pop %v628
    %v645 = vrsqrt.pop %v629
    %v646 = vrsqrt.pop %v630
    %v647 = vrsqrt.pop %v631
    %v648 = vrsqrt.pop %v632
    %v649 = vrsqrt.pop %v633
    %v650 = vrsqrt.pop %v634
    %v651 = vrsqrt.pop %v635
    %v652 = vrsqrt.pop %v636
    %v653 = vrsqrt.pop %v637
    %v654 = vrsqrt.pop %v638
    %v655 = vmul.f32 %v497, %v639
    %v656 = vmul.f32 %v502, %v640
    %v657 = vmul.f32 %v507, %v641
    %v658 = vmul.f32 %v512, %v642
    %v659 = vmul.f32 %v517, %v643
    %v660 = vmul.f32 %v522, %v644
    %v661 = vmul.f32 %v527, %v645
    %v662 = vmul.f32 %v532, %v646
    %v663 = vmul.f32 %v537, %v647
    %v664 = vmul.f32 %v542, %v648
    %v665 = vmul.f32 %v547, %v649
    %v666 = vmul.f32 %v552, %v650
    %v667 = vmul.f32 %v557, %v651
    %v668 = vmul.f32 %v562, %v652
    %v669 = vmul.f32 %v567, %v653
    %v670 = vmul.f32 %v572, %v654
    %v671 = vld [vmem:[%s2] sm:$0xff]
    %v672 = vld [vmem:[%s2 + $0x8] sm:$0xff]
    %v673 = vld [vmem:[%s2 + $0x10] sm:$0xff]
    %v674 = vld [vmem:[%s2 + $0x18] sm:$0xff]
    %v675 = vld [vmem:[%s2 + $0x20] sm:$0xff]
    %v676 = vld [vmem:[%s2 + $0x28] sm:$0xff]
    %v677 = vld [vmem:[%s2 + $0x30] sm:$0xff]
    %v678 = vld [vmem:[%s2 + $0x38] sm:$0xff]
    %v679 = vld [vmem:[%s2 + $0x40] sm:$0xff]
    %v680 = vld [vmem:[%s2 + $0x48] sm:$0xff]
    %v681 = vld [vmem:[%s2 + $0x50] sm:$0xff]
    %v682 = vld [vmem:[%s2 + $0x58] sm:$0xff]
    %v683 = vld [vmem:[%s2 + $0x60] sm:$0xff]
    %v684 = vld [vmem:[%s2 + $0x68] sm:$0xff]
    %v685 = vld [vmem:[%s2 + $0x70] sm:$0xff]
    %v686 = vld [vmem:[%s2 + $0x78] sm:$0xff]
    %v687 = vmul.f32 %v671, %v671
    %v688 = vmul.f32 %v672, %v672
    %v689 = vmul.f32 %v673, %v673
    %v690 = vmul.f32 %v674, %v674
    %v691 = vmul.f32 %v675, %v675
    %v692 = vmul.f32 %v676, %v676
    %v693 = vmul.f32 %v677, %v677
    %v694 = vmul.f32 %v678, %v678
    %v695 = vmul.f32 %v679, %v679
    %v696 = vmul.f32 %v680, %v680
    %v697 = vmul.f32 %v681, %v681
    %v698 = vmul.f32 %v682, %v682
    %v699 = vmul.f32 %v683, %v683
    %v700 = vmul.f32 %v684, %v684
    %v701 = vmul.f32 %v685, %v685
    %v702 = vmul.f32 %v686, %v686
    %703 = vadd.xlane.f32.xlu0 %v687
    %v704 = vpop.xlane.xlu0 %703
    %705 = vadd.xlane.f32.xlu0 %v688
    %v706 = vpop.xlane.xlu0 %705
    %707 = vadd.xlane.f32.xlu0 %v689
    %v708 = vpop.xlane.xlu0 %707
    %709 = vadd.xlane.f32.xlu0 %v690
    %v710 = vpop.xlane.xlu0 %709
    %711 = vadd.xlane.f32.xlu0 %v691
    %v712 = vpop.xlane.xlu0 %711
    %713 = vadd.xlane.f32.xlu0 %v692
    %v714 = vpop.xlane.xlu0 %713
    %715 = vadd.xlane.f32.xlu0 %v693
    %v716 = vpop.xlane.xlu0 %715
    %717 = vadd.xlane.f32.xlu0 %v694
    %v718 = vpop.xlane.xlu0 %717
    %719 = vadd.xlane.f32.xlu0 %v695
    %v720 = vpop.xlane.xlu0 %719
    %721 = vadd.xlane.f32.xlu0 %v696
    %v722 = vpop.xlane.xlu0 %721
    %723 = vadd.xlane.f32.xlu0 %v697
    %v724 = vpop.xlane.xlu0 %723
    %725 = vadd.xlane.f32.xlu0 %v698
    %v726 = vpop.xlane.xlu0 %725
    %727 = vadd.xlane.f32.xlu0 %v699
    %v728 = vpop.xlane.xlu0 %727
    %729 = vadd.xlane.f32.xlu0 %v700
    %v730 = vpop.xlane.xlu0 %729
    %731 = vadd.xlane.f32.xlu0 %v701
    %v732 = vpop.xlane.xlu0 %731
    %733 = vadd.xlane.f32.xlu0 %v702
    %v734 = vpop.xlane.xlu0 %733
    %v735 = vrsqrt.pop %v704
    %v736 = vmul.f32 %v704, %v735
    %vm737 = vcmp.eq.f32.partialorder %v704, inf
    %v738 = vsel %vm737, %v704, %v736
    %vm739 = vcmp.eq.f32.partialorder %v704, 0.0
    %v740 = vand.u32 %v704, 2147483648
    %v741 = vsel %vm739, %v740, %v738
    %v742 = vrsqrt.pop %v706
    %v743 = vmul.f32 %v706, %v742
    %vm744 = vcmp.eq.f32.partialorder %v706, inf
    %v745 = vsel %vm744, %v706, %v743
    %vm746 = vcmp.eq.f32.partialorder %v706, 0.0
    %v747 = vand.u32 %v706, 2147483648
    %v748 = vsel %vm746, %v747, %v745
    %v749 = vrsqrt.pop %v708
    %v750 = vmul.f32 %v708, %v749
    %vm751 = vcmp.eq.f32.partialorder %v708, inf
    %v752 = vsel %vm751, %v708, %v750
    %vm753 = vcmp.eq.f32.partialorder %v708, 0.0
    %v754 = vand.u32 %v708, 2147483648
    %v755 = vsel %vm753, %v754, %v752
    %v756 = vrsqrt.pop %v710
    %v757 = vmul.f32 %v710, %v756
    %vm758 = vcmp.eq.f32.partialorder %v710, inf
    %v759 = vsel %vm758, %v710, %v757
    %vm760 = vcmp.eq.f32.partialorder %v710, 0.0
    %v761 = vand.u32 %v710, 2147483648
    %v762 = vsel %vm760, %v761, %v759
    %v763 = vrsqrt.pop %v712
    %v764 = vmul.f32 %v712, %v763
    %vm765 = vcmp.eq.f32.partialorder %v712, inf
    %v766 = vsel %vm765, %v712, %v764
    %vm767 = vcmp.eq.f32.partialorder %v712, 0.0
    %v768 = vand.u32 %v712, 2147483648
    %v769 = vsel %vm767, %v768, %v766
    %v770 = vrsqrt.pop %v714
    %v771 = vmul.f32 %v714, %v770
    %vm772 = vcmp.eq.f32.partialorder %v714, inf
    %v773 = vsel %vm772, %v714, %v771
    %vm774 = vcmp.eq.f32.partialorder %v714, 0.0
    %v775 = vand.u32 %v714, 2147483648
    %v776 = vsel %vm774, %v775, %v773
    %v777 = vrsqrt.pop %v716
    %v778 = vmul.f32 %v716, %v777
    %vm779 = vcmp.eq.f32.partialorder %v716, inf
    %v780 = vsel %vm779, %v716, %v778
    %vm781 = vcmp.eq.f32.partialorder %v716, 0.0
    %v782 = vand.u32 %v716, 2147483648
    %v783 = vsel %vm781, %v782, %v780
    %v784 = vrsqrt.pop %v718
    %v785 = vmul.f32 %v718, %v784
    %vm786 = vcmp.eq.f32.partialorder %v718, inf
    %v787 = vsel %vm786, %v718, %v785
    %vm788 = vcmp.eq.f32.partialorder %v718, 0.0
    %v789 = vand.u32 %v718, 2147483648
    %v790 = vsel %vm788, %v789, %v787
    %v791 = vrsqrt.pop %v720
    %v792 = vmul.f32 %v720, %v791
    %vm793 = vcmp.eq.f32.partialorder %v720, inf
    %v794 = vsel %vm793, %v720, %v792
    %vm795 = vcmp.eq.f32.partialorder %v720, 0.0
    %v796 = vand.u32 %v720, 2147483648
    %v797 = vsel %vm795, %v796, %v794
    %v798 = vrsqrt.pop %v722
    %v799 = vmul.f32 %v722, %v798
    %vm800 = vcmp.eq.f32.partialorder %v722, inf
    %v801 = vsel %vm800, %v722, %v799
    %vm802 = vcmp.eq.f32.partialorder %v722, 0.0
    %v803 = vand.u32 %v722, 2147483648
    %v804 = vsel %vm802, %v803, %v801
    %v805 = vrsqrt.pop %v724
    %v806 = vmul.f32 %v724, %v805
    %vm807 = vcmp.eq.f32.partialorder %v724, inf
    %v808 = vsel %vm807, %v724, %v806
    %vm809 = vcmp.eq.f32.partialorder %v724, 0.0
    %v810 = vand.u32 %v724, 2147483648
    %v811 = vsel %vm809, %v810, %v808
    %v812 = vrsqrt.pop %v726
    %v813 = vmul.f32 %v726, %v812
    %vm814 = vcmp.eq.f32.partialorder %v726, inf
    %v815 = vsel %vm814, %v726, %v813
    %vm816 = vcmp.eq.f32.partialorder %v726, 0.0
    %v817 = vand.u32 %v726, 2147483648
    %v818 = vsel %vm816, %v817, %v815
    %v819 = vrsqrt.pop %v728
    %v820 = vmul.f32 %v728, %v819
    %vm821 = vcmp.eq.f32.partialorder %v728, inf
    %v822 = vsel %vm821, %v728, %v820
    %vm823 = vcmp.eq.f32.partialorder %v728, 0.0
    %v824 = vand.u32 %v728, 2147483648
    %v825 = vsel %vm823, %v824, %v822
    %v826 = vrsqrt.pop %v730
    %v827 = vmul.f32 %v730, %v826
    %vm828 = vcmp.eq.f32.partialorder %v730, inf
    %v829 = vsel %vm828, %v730, %v827
    %vm830 = vcmp.eq.f32.partialorder %v730, 0.0
    %v831 = vand.u32 %v730, 2147483648
    %v832 = vsel %vm830, %v831, %v829
    %v833 = vrsqrt.pop %v732
    %v834 = vmul.f32 %v732, %v833
    %vm835 = vcmp.eq.f32.partialorder %v732, inf
    %v836 = vsel %vm835, %v732, %v834
    %vm837 = vcmp.eq.f32.partialorder %v732, 0.0
    %v838 = vand.u32 %v732, 2147483648
    %v839 = vsel %vm837, %v838, %v836
    %v840 = vrsqrt.pop %v734
    %v841 = vmul.f32 %v734, %v840
    %vm842 = vcmp.eq.f32.partialorder %v734, inf
    %v843 = vsel %vm842, %v734, %v841
    %vm844 = vcmp.eq.f32.partialorder %v734, 0.0
    %v845 = vand.u32 %v734, 2147483648
    %v846 = vsel %vm844, %v845, %v843
    %v847 = vmul.f32 %v655, %v741
    %v848 = vmul.f32 %v656, %v748
    %v849 = vmul.f32 %v657, %v755
    %v850 = vmul.f32 %v658, %v762
    %v851 = vmul.f32 %v659, %v769
    %v852 = vmul.f32 %v660, %v776
    %v853 = vmul.f32 %v661, %v783
    %v854 = vmul.f32 %v662, %v790
    %v855 = vmul.f32 %v663, %v797
    %v856 = vmul.f32 %v664, %v804
    %v857 = vmul.f32 %v665, %v811
    %v858 = vmul.f32 %v666, %v818
    %v859 = vmul.f32 %v667, %v825
    %v860 = vmul.f32 %v668, %v832
    %v861 = vmul.f32 %v669, %v839
    %v862 = vmul.f32 %v670, %v846
    %s863 = sld [smem:[#allocation3]]
    %v864 = vstv %s863
    %v865 = vmul.f32 %v847, %v864
    %v866 = vmul.f32 %v848, %v864
    %v867 = vmul.f32 %v849, %v864
    %v868 = vmul.f32 %v850, %v864
    %v869 = vmul.f32 %v851, %v864
    %v870 = vmul.f32 %v852, %v864
    %v871 = vmul.f32 %v853, %v864
    %v872 = vmul.f32 %v854, %v864
    %v873 = vmul.f32 %v855, %v864
    %v874 = vmul.f32 %v856, %v864
    %v875 = vmul.f32 %v857, %v864
    %v876 = vmul.f32 %v858, %v864
    %v877 = vmul.f32 %v859, %v864
    %v878 = vmul.f32 %v860, %v864
    %v879 = vmul.f32 %v861, %v864
    %v880 = vmul.f32 %v862, %v864
    %v881 = vmul.f32 %v865, 0.5
    %v882 = vmul.f32 %v866, 0.5
    %v883 = vmul.f32 %v867, 0.5
    %v884 = vmul.f32 %v868, 0.5
    %v885 = vmul.f32 %v869, 0.5
    %v886 = vmul.f32 %v870, 0.5
    %v887 = vmul.f32 %v871, 0.5
    %v888 = vmul.f32 %v872, 0.5
    %v889 = vmul.f32 %v873, 0.5
    %v890 = vmul.f32 %v874, 0.5
    %v891 = vmul.f32 %v875, 0.5
    %v892 = vmul.f32 %v876, 0.5
    %v893 = vmul.f32 %v877, 0.5
    %v894 = vmul.f32 %v878, 0.5
    %v895 = vmul.f32 %v879, 0.5
    %v896 = vmul.f32 %v880, 0.5
    %v897 = vmul.f32 %v865, 0.70710677
    %v898 = vmul.f32 %v866, 0.70710677
    %v899 = vmul.f32 %v867, 0.70710677
    %v900 = vmul.f32 %v868, 0.70710677
    %v901 = vmul.f32 %v869, 0.70710677
    %v902 = vmul.f32 %v870, 0.70710677
    %v903 = vmul.f32 %v871, 0.70710677
    %v904 = vmul.f32 %v872, 0.70710677
    %v905 = vmul.f32 %v873, 0.70710677
    %v906 = vmul.f32 %v874, 0.70710677
    %v907 = vmul.f32 %v875, 0.70710677
    %v908 = vmul.f32 %v876, 0.70710677
    %v909 = vmul.f32 %v877, 0.70710677
    %v910 = vmul.f32 %v878, 0.70710677
    %v911 = vmul.f32 %v879, 0.70710677
    %v912 = vmul.f32 %v880, 0.70710677
    %v913 = verf.f32.pop %v897
    %v914 = verf.f32.pop %v898
    %v915 = verf.f32.pop %v899
    %v916 = verf.f32.pop %v900
    %v917 = verf.f32.pop %v901
    %v918 = verf.f32.pop %v902
    %v919 = verf.f32.pop %v903
    %v920 = verf.f32.pop %v904
    %v921 = verf.f32.pop %v905
    %v922 = verf.f32.pop %v906
    %v923 = verf.f32.pop %v907
    %v924 = verf.f32.pop %v908
    %v925 = verf.f32.pop %v909
    %v926 = verf.f32.pop %v910
    %v927 = verf.f32.pop %v911
    %v928 = verf.f32.pop %v912
    %v929 = vadd.f32 %v913, 1.0
    %v930 = vadd.f32 %v914, 1.0
    %v931 = vadd.f32 %v915, 1.0
    %v932 = vadd.f32 %v916, 1.0
    %v933 = vadd.f32 %v917, 1.0
    %v934 = vadd.f32 %v918, 1.0
    %v935 = vadd.f32 %v919, 1.0
    %v936 = vadd.f32 %v920, 1.0
    %v937 = vadd.f32 %v921, 1.0
    %v938 = vadd.f32 %v922, 1.0
    %v939 = vadd.f32 %v923, 1.0
    %v940 = vadd.f32 %v924, 1.0
    %v941 = vadd.f32 %v925, 1.0
    %v942 = vadd.f32 %v926, 1.0
    %v943 = vadd.f32 %v927, 1.0
    %v944 = vadd.f32 %v928, 1.0
    %v945 = vmul.f32 %v881, %v929
    %v946 = vmul.f32 %v882, %v930
    %v947 = vmul.f32 %v883, %v931
    %v948 = vmul.f32 %v884, %v932
    %v949 = vmul.f32 %v885, %v933
    %v950 = vmul.f32 %v886, %v934
    %v951 = vmul.f32 %v887, %v935
    %v952 = vmul.f32 %v888, %v936
    %v953 = vmul.f32 %v889, %v937
    %v954 = vmul.f32 %v890, %v938
    %v955 = vmul.f32 %v891, %v939
    %v956 = vmul.f32 %v892, %v940
    %v957 = vmul.f32 %v893, %v941
    %v958 = vmul.f32 %v894, %v942
    %v959 = vmul.f32 %v895, %v943
    %v960 = vmul.f32 %v896, %v944
    %v961 = vpack.c.bf16 %v946, %v945
    %v962 = vpack.c.bf16 %v948, %v947
    %v963 = vpack.c.bf16 %v950, %v949
    %v964 = vpack.c.bf16 %v952, %v951
    %v965 = vpack.c.bf16 %v954, %v953
    %v966 = vpack.c.bf16 %v956, %v955
    %v967 = vpack.c.bf16 %v958, %v957
    %v968 = vpack.c.bf16 %v960, %v959
    %v977 = vunpack.c.l.b16 %v961
    %v978 = vunpack.c.h.b16 %v961
    %v979 = vunpack.c.l.b16 %v962
    %v980 = vunpack.c.h.b16 %v962
    %v981 = vunpack.c.l.b16 %v963
    %v982 = vunpack.c.h.b16 %v963
    %v983 = vunpack.c.l.b16 %v964
    %v984 = vunpack.c.h.b16 %v964
    %v985 = vunpack.c.l.b16 %v965
    %v986 = vunpack.c.h.b16 %v965
    %v987 = vunpack.c.l.b16 %v966
    %v988 = vunpack.c.h.b16 %v966
    %v989 = vunpack.c.l.b16 %v967
    %v990 = vunpack.c.h.b16 %v967
    %v991 = vunpack.c.l.b16 %v968
    %v992 = vunpack.c.h.b16 %v968
    %v993 = vpack.c.b16 %v977, %v977
    %v994 = vpack.c.b16 %v978, %v978
    %v995 = vpack.c.b16 %v979, %v979
    %v996 = vpack.c.b16 %v980, %v980
    %v997 = vpack.c.b16 %v981, %v981
    %v998 = vpack.c.b16 %v982, %v982
    %v999 = vpack.c.b16 %v983, %v983
    %v1000 = vpack.c.b16 %v984, %v984
    %v1001 = vpack.c.b16 %v985, %v985
    %v1002 = vpack.c.b16 %v986, %v986
    %v1003 = vpack.c.b16 %v987, %v987
    %v1004 = vpack.c.b16 %v988, %v988
    %v1005 = vpack.c.b16 %v989, %v989
    %v1006 = vpack.c.b16 %v990, %v990
    %v1007 = vpack.c.b16 %v991, %v991
    %v1008 = vpack.c.b16 %v992, %v992
    %1025 = vst [vmem:[%s7] sm:$0xf] %v993
    %1026 = vst [vmem:[%s7 + $0x4] sm:$0xf] %v994
    %1027 = vst [vmem:[%s7 + $0x8] sm:$0xf] %v995
    %1028 = vst [vmem:[%s7 + $0xc] sm:$0xf] %v996
    %1029 = vst [vmem:[%s7 + $0x10] sm:$0xf] %v997
    %1030 = vst [vmem:[%s7 + $0x14] sm:$0xf] %v998
    %1031 = vst [vmem:[%s7 + $0x18] sm:$0xf] %v999
    %1032 = vst [vmem:[%s7 + $0x1c] sm:$0xf] %v1000
    %1033 = vst [vmem:[%s7 + $0x20] sm:$0xf] %v1001
    %1034 = vst [vmem:[%s7 + $0x24] sm:$0xf] %v1002
    %1035 = vst [vmem:[%s7 + $0x28] sm:$0xf] %v1003
    %1036 = vst [vmem:[%s7 + $0x2c] sm:$0xf] %v1004
    %1037 = vst [vmem:[%s7 + $0x30] sm:$0xf] %v1005
    %1038 = vst [vmem:[%s7 + $0x34] sm:$0xf] %v1006
    %1039 = vst [vmem:[%s7 + $0x38] sm:$0xf] %v1007
    %1040 = vst [vmem:[%s7 + $0x3c] sm:$0xf] %v1008
    %v1041 = vmul.f32 %v945, %v314
    %v1042 = vmul.f32 %v946, %v319
    %v1043 = vmul.f32 %v947, %v324
    %v1044 = vmul.f32 %v948, %v329
    %v1045 = vmul.f32 %v949, %v334
    %v1046 = vmul.f32 %v950, %v339
    %v1047 = vmul.f32 %v951, %v344
    %v1048 = vmul.f32 %v952, %v349
    %v1049 = vmul.f32 %v953, %v354
    %v1050 = vmul.f32 %v954, %v359
    %v1051 = vmul.f32 %v955, %v364
    %v1052 = vmul.f32 %v956, %v369
    %v1053 = vmul.f32 %v957, %v374
    %v1054 = vmul.f32 %v958, %v379
    %v1055 = vmul.f32 %v959, %v384
    %v1056 = vmul.f32 %v960, %v389
    %v1057 = vpack.c.bf16 %v1042, %v1041
    %v1058 = vpack.c.bf16 %v1044, %v1043
    %v1059 = vpack.c.bf16 %v1046, %v1045
    %v1060 = vpack.c.bf16 %v1048, %v1047
    %v1061 = vpack.c.bf16 %v1050, %v1049
    %v1062 = vpack.c.bf16 %v1052, %v1051
    %v1063 = vpack.c.bf16 %v1054, %v1053
    %v1064 = vpack.c.bf16 %v1056, %v1055
    %v1073 = vunpack.c.l.b16 %v1057
    %v1074 = vunpack.c.h.b16 %v1057
    %v1075 = vunpack.c.l.b16 %v1058
    %v1076 = vunpack.c.h.b16 %v1058
    %v1077 = vunpack.c.l.b16 %v1059
    %v1078 = vunpack.c.h.b16 %v1059
    %v1079 = vunpack.c.l.b16 %v1060
    %v1080 = vunpack.c.h.b16 %v1060
    %v1081 = vunpack.c.l.b16 %v1061
    %v1082 = vunpack.c.h.b16 %v1061
    %v1083 = vunpack.c.l.b16 %v1062
    %v1084 = vunpack.c.h.b16 %v1062
    %v1085 = vunpack.c.l.b16 %v1063
    %v1086 = vunpack.c.h.b16 %v1063
    %v1087 = vunpack.c.l.b16 %v1064
    %v1088 = vunpack.c.h.b16 %v1064
    %v1089 = vpack.c.b16 %v1073, %v1073
    %v1090 = vpack.c.b16 %v1074, %v1074
    %v1091 = vpack.c.b16 %v1075, %v1075
    %v1092 = vpack.c.b16 %v1076, %v1076
    %v1093 = vpack.c.b16 %v1077, %v1077
    %v1094 = vpack.c.b16 %v1078, %v1078
    %v1095 = vpack.c.b16 %v1079, %v1079
    %v1096 = vpack.c.b16 %v1080, %v1080
    %v1097 = vpack.c.b16 %v1081, %v1081
    %v1098 = vpack.c.b16 %v1082, %v1082
    %v1099 = vpack.c.b16 %v1083, %v1083
    %v1100 = vpack.c.b16 %v1084, %v1084
    %v1101 = vpack.c.b16 %v1085, %v1085
    %v1102 = vpack.c.b16 %v1086, %v1086
    %v1103 = vpack.c.b16 %v1087, %v1087
    %v1104 = vpack.c.b16 %v1088, %v1088
    %1121 = vst [vmem:[%s8] sm:$0xf] %v1089
    %1122 = vst [vmem:[%s8 + $0x4] sm:$0xf] %v1090
    %1123 = vst [vmem:[%s8 + $0x8] sm:$0xf] %v1091
    %1124 = vst [vmem:[%s8 + $0xc] sm:$0xf] %v1092
    %1125 = vst [vmem:[%s8 + $0x10] sm:$0xf] %v1093
    %1126 = vst [vmem:[%s8 + $0x14] sm:$0xf] %v1094
    %1127 = vst [vmem:[%s8 + $0x18] sm:$0xf] %v1095
    %1128 = vst [vmem:[%s8 + $0x1c] sm:$0xf] %v1096
    %1129 = vst [vmem:[%s8 + $0x20] sm:$0xf] %v1097
    %1130 = vst [vmem:[%s8 + $0x24] sm:$0xf] %v1098
    %1131 = vst [vmem:[%s8 + $0x28] sm:$0xf] %v1099
    %1132 = vst [vmem:[%s8 + $0x2c] sm:$0xf] %v1100
    %1133 = vst [vmem:[%s8 + $0x30] sm:$0xf] %v1101
    %1134 = vst [vmem:[%s8 + $0x34] sm:$0xf] %v1102
    %1135 = vst [vmem:[%s8 + $0x38] sm:$0xf] %v1103
    %1136 = vst [vmem:[%s8 + $0x3c] sm:$0xf] %v1104
  $region37: #{_gcnffn_padded.3} parent=0 // pred_fallthru
    _
  // Predicated region
  $region38: #{_gcnffn_padded.3} parent=0 // pred_check
    _
  $region39: #{_gcnffn_padded.3} parent=0 // pred_check_branch
    %1138 = sbr.rel (0) target = $region41
  $region40: #{_gcnffn_padded.3} parent=0 // pred_region
    _
  $region41: #{_gcnffn_padded.3} parent=0 // pred_fallthru
    _
  // Predicated region
  $region42: #{_gcnffn_padded.3} parent=0 // pred_check
    _
  $region43: #{_gcnffn_padded.3} parent=0 // pred_check_branch
    %1140 = sbr.rel (0) target = $region45
  $region44: #{_gcnffn_padded.3} parent=0 // pred_region
    _
  $region45: #{_gcnffn_padded.3} parent=0 // pred_fallthru
    _
  // Predicated region
  $region46: #{_gcnffn_padded.3} parent=0 // pred_check
    _
  $region47: #{_gcnffn_padded.3} parent=0 // pred_check_branch
    %1142 = sbr.rel (0) target = $region49
  $region48: #{_gcnffn_padded.3} parent=0 // pred_region
    _
  $region49: #{_gcnffn_padded.3} parent=0 // pred_fallthru
    _
  // Predicated region
  $region50: #{_gcnffn_padded.3} parent=0 // pred_check
    _
  $region51: #{_gcnffn_padded.3} parent=0 // pred_check_branch
    %1144 = sbr.rel (0) target = $region53
  $region52: #{_gcnffn_padded.3} parent=0 // pred_region
    _
  $region53: #{_gcnffn_padded.3} parent=0 // pred_fallthru
    _

// kernel: _gcnffn_padded.4
$region0: #{_gcnffn_padded.4}
  #allocation0 [shape = 'u32[]', space=smem, size = 0x4, offset = 0x4, fixed_abs, tag = 'smem constant byte address 0x4 - core index']
  #allocation1 [shape = 'u32[144,128]{1,0:T(1,128)}', space=vmem, size = 0x12000, scoped, tag = 'internal scratch']
  #allocation2 [shape = 'f32[128,128]{1,0:T(8,128)}', space=vmem, size = 0x10000, scoped, tag = 'scratch operand']
  #allocation3 [shape = 'f32[1,1]{1,0:T(1,128)S(6)}', space=smem, size = 0x200, scoped, tag = 'scoped memory for _gcnffn_padded.4']
  %s0 = inlined_call_operand.vmem [shape: s8[128,128], index: 0, kind: input, shape index: {}]
  %s1 = inlined_call_operand.vmem [shape: bf16[128,128], index: 1, kind: input, shape index: {}]
  %s2 = inlined_call_operand.vmem [shape: bf16[128,128], index: 2, kind: input, shape index: {}]
  %s3 = inlined_call_operand.vmem [shape: f32[128,128], index: 3, kind: input, shape index: {}]
  %s4 = inlined_call_operand.vmem [shape: f32[128,1], index: 4, kind: input, shape index: {}]
  %s5 = inlined_call_operand.vmem [shape: f32[128,128], index: 5, kind: input, shape index: {}]
  %s6 = inlined_call_operand.vmem [shape: f32[1,128], index: 6, kind: input, shape index: {}]
  %s7 = inlined_call_operand.<no memory space> [shape: f32[1,1], index: 7, kind: input, shape index: {}]
  %s8 = inlined_call_operand.vmem [shape: f32[128,128], index: 8, kind: output, shape index: {0}]
  %s9 = inlined_call_operand.vmem [shape: f32[8,128], index: 9, kind: output, shape index: {1}]
  %s10 = inlined_call_operand.vmem [shape: f32[8,128], index: 10, kind: output, shape index: {2}]
  %11 = xla_tuple %s8, %s9, %s10
  %s12 = sld [smem:[#allocation0]]
  $region66: #{_gcnffn_padded.4} parent=0
    _
  %s14 = ssub.s32 1, %s12
  %s15 = scalar_select 0, %s14, %s12
  %16 = sst [smem:[#allocation3]] %s7
  // Predicated region
  $region2: #{_gcnffn_padded.4} parent=0 // pred_check
    _
  $region3: #{_gcnffn_padded.4} parent=0 // pred_check_branch
    %18 = sbr.rel (0) target = $region5
  $region4: #{_gcnffn_padded.4} parent=0 // pred_region
    _
  $region5: #{_gcnffn_padded.4} parent=0 // pred_fallthru
    _
  // Predicated region
  $region6: #{_gcnffn_padded.4} parent=0 // pred_check
    _
  $region7: #{_gcnffn_padded.4} parent=0 // pred_check_branch
    %20 = sbr.rel (0) target = $region9
  $region8: #{_gcnffn_padded.4} parent=0 // pred_region
    _
  $region9: #{_gcnffn_padded.4} parent=0 // pred_fallthru
    _
  // Predicated region
  $region10: #{_gcnffn_padded.4} parent=0 // pred_check
    _
  $region11: #{_gcnffn_padded.4} parent=0 // pred_check_branch
    %22 = sbr.rel (0) target = $region13
  $region12: #{_gcnffn_padded.4} parent=0 // pred_region
    _
  $region13: #{_gcnffn_padded.4} parent=0 // pred_fallthru
    _
  // Predicated region
  $region14: #{_gcnffn_padded.4} parent=0 // pred_check
    _
  $region15: #{_gcnffn_padded.4} parent=0 // pred_check_branch
    %24 = sbr.rel (0) target = $region17
  $region16: #{_gcnffn_padded.4} parent=0 // pred_region
    _
  $region17: #{_gcnffn_padded.4} parent=0 // pred_fallthru
    _
  // Predicated region
  $region18: #{_gcnffn_padded.4} parent=0 // pred_check
    _
  $region19: #{_gcnffn_padded.4} parent=0 // pred_check_branch
    %26 = sbr.rel (0) target = $region21
  $region20: #{_gcnffn_padded.4} parent=0 // pred_region
    _
  $region21: #{_gcnffn_padded.4} parent=0 // pred_fallthru
    _
  // Predicated region
  $region22: #{_gcnffn_padded.4} parent=0 // pred_check
    _
  $region23: #{_gcnffn_padded.4} parent=0 // pred_check_branch
    %28 = sbr.rel (0) target = $region25
  $region24: #{_gcnffn_padded.4} parent=0 // pred_region
    _
  $region25: #{_gcnffn_padded.4} parent=0 // pred_fallthru
    _
  // Predicated region
  $region26: #{_gcnffn_padded.4} parent=0 // pred_check
    _
  $region27: #{_gcnffn_padded.4} parent=0 // pred_check_branch
    %30 = sbr.rel (0) target = $region29
  $region28: #{_gcnffn_padded.4} parent=0 // pred_region
    _
  $region29: #{_gcnffn_padded.4} parent=0 // pred_fallthru
    _
  // Predicated region
  $region30: #{_gcnffn_padded.4} parent=0 // pred_check
    _
  $region31: #{_gcnffn_padded.4} parent=0 // pred_check_branch
    %32 = sbr.rel (0) target = $region33
  $region32: #{_gcnffn_padded.4} parent=0 // pred_region
    _
  $region33: #{_gcnffn_padded.4} parent=0 // pred_fallthru
    _
  %p34 = scmp.eq.s32.totalorder 0, 0
  // Predicated region
  $region34: #{_gcnffn_padded.4} parent=0 // pred_check
    %p35 = pneg %p34
  $region35: #{_gcnffn_padded.4} parent=0 // pred_check_branch
    %37 = sbr.rel (%p35) target = $region37
  $region36: #{_gcnffn_padded.4} parent=0 // pred_region
    %38 = vst [vmem:[#allocation2] sm:$0xff] 0.0
    %39 = vst [vmem:[#allocation2 + $0x8] sm:$0xff] 0.0
    %40 = vst [vmem:[#allocation2 + $0x10] sm:$0xff] 0.0
    %41 = vst [vmem:[#allocation2 + $0x18] sm:$0xff] 0.0
    %42 = vst [vmem:[#allocation2 + $0x20] sm:$0xff] 0.0
    %43 = vst [vmem:[#allocation2 + $0x28] sm:$0xff] 0.0
    %44 = vst [vmem:[#allocation2 + $0x30] sm:$0xff] 0.0
    %45 = vst [vmem:[#allocation2 + $0x38] sm:$0xff] 0.0
    %46 = vst [vmem:[#allocation2 + $0x40] sm:$0xff] 0.0
    %47 = vst [vmem:[#allocation2 + $0x48] sm:$0xff] 0.0
    %48 = vst [vmem:[#allocation2 + $0x50] sm:$0xff] 0.0
    %49 = vst [vmem:[#allocation2 + $0x58] sm:$0xff] 0.0
    %50 = vst [vmem:[#allocation2 + $0x60] sm:$0xff] 0.0
    %51 = vst [vmem:[#allocation2 + $0x68] sm:$0xff] 0.0
    %52 = vst [vmem:[#allocation2 + $0x70] sm:$0xff] 0.0
    %53 = vst [vmem:[#allocation2 + $0x78] sm:$0xff] 0.0
  $region37: #{_gcnffn_padded.4} parent=0 // pred_fallthru
    _
  %s54 = smul.u32 0, 128
  %s55 = sshra.s32 %s54, 3
  %s56 = sand.u32 %s54, 7
  %s57 = smul.addr %s55, 4
  %s58 = scalar_lea.vmem %s1, %s57
  %v59 = vld [vmem:[%s58] sm:$0xf]
  %v60 = vld [vmem:[%s58 + $0x4] sm:$0xf]
  %v61 = vld [vmem:[%s58 + $0x8] sm:$0xf]
  %v62 = vld [vmem:[%s58 + $0xc] sm:$0xf]
  %v63 = vld [vmem:[%s58 + $0x10] sm:$0xf]
  %v64 = vld [vmem:[%s58 + $0x14] sm:$0xf]
  %v65 = vld [vmem:[%s58 + $0x18] sm:$0xf]
  %v66 = vld [vmem:[%s58 + $0x1c] sm:$0xf]
  %v67 = vld [vmem:[%s58 + $0x20] sm:$0xf]
  %v68 = vld [vmem:[%s58 + $0x24] sm:$0xf]
  %v69 = vld [vmem:[%s58 + $0x28] sm:$0xf]
  %v70 = vld [vmem:[%s58 + $0x2c] sm:$0xf]
  %v71 = vld [vmem:[%s58 + $0x30] sm:$0xf]
  %v72 = vld [vmem:[%s58 + $0x34] sm:$0xf]
  %v73 = vld [vmem:[%s58 + $0x38] sm:$0xf]
  %v74 = vld [vmem:[%s58 + $0x3c] sm:$0xf]
  %v75 = vld [vmem:[#allocation2] sm:$0xff]
  %v76 = vld [vmem:[#allocation2 + $0x8] sm:$0xff]
  %v77 = vld [vmem:[#allocation2 + $0x10] sm:$0xff]
  %v78 = vld [vmem:[#allocation2 + $0x18] sm:$0xff]
  %v79 = vld [vmem:[#allocation2 + $0x20] sm:$0xff]
  %v80 = vld [vmem:[#allocation2 + $0x28] sm:$0xff]
  %v81 = vld [vmem:[#allocation2 + $0x30] sm:$0xff]
  %v82 = vld [vmem:[#allocation2 + $0x38] sm:$0xff]
  %v83 = vld [vmem:[#allocation2 + $0x40] sm:$0xff]
  %v84 = vld [vmem:[#allocation2 + $0x48] sm:$0xff]
  %v85 = vld [vmem:[#allocation2 + $0x50] sm:$0xff]
  %v86 = vld [vmem:[#allocation2 + $0x58] sm:$0xff]
  %v87 = vld [vmem:[#allocation2 + $0x60] sm:$0xff]
  %v88 = vld [vmem:[#allocation2 + $0x68] sm:$0xff]
  %v89 = vld [vmem:[#allocation2 + $0x70] sm:$0xff]
  %v90 = vld [vmem:[#allocation2 + $0x78] sm:$0xff]
  %v91 = vld [vmem:[%s0] sm:$0xff]
  %v92 = vld [vmem:[%s0 + $0x8] sm:$0xff]
  %v93 = vld [vmem:[%s0 + $0x10] sm:$0xff]
  %v94 = vld [vmem:[%s0 + $0x18] sm:$0xff]
  %v95 = vunpack.c.l.s8.bf16 %v91
  %v96 = vunpack.c.h.s8.bf16 %v91
  %v97 = vunpack.c.l.s8.bf16 %v92
  %v98 = vunpack.c.h.s8.bf16 %v92
  %v99 = vunpack.c.l.s8.bf16 %v93
  %v100 = vunpack.c.h.s8.bf16 %v93
  %v101 = vunpack.c.l.s8.bf16 %v94
  %v102 = vunpack.c.h.s8.bf16 %v94
  %v119 = vunpack.c.l.b16 %v59
  %v120 = vunpack.c.l.b16 %v60
  %v121 = vunpack.c.l.b16 %v61
  %v122 = vunpack.c.l.b16 %v62
  %v123 = vunpack.c.l.b16 %v63
  %v124 = vunpack.c.l.b16 %v64
  %v125 = vunpack.c.l.b16 %v65
  %v126 = vunpack.c.l.b16 %v66
  %v127 = vunpack.c.l.b16 %v67
  %v128 = vunpack.c.l.b16 %v68
  %v129 = vunpack.c.l.b16 %v69
  %v130 = vunpack.c.l.b16 %v70
  %v131 = vunpack.c.l.b16 %v71
  %v132 = vunpack.c.l.b16 %v72
  %v133 = vunpack.c.l.b16 %v73
  %v134 = vunpack.c.l.b16 %v74
  %v135 = vpack.c.b16 %v120, %v119
  %v136 = vpack.c.b16 %v122, %v121
  %v137 = vpack.c.b16 %v124, %v123
  %v138 = vpack.c.b16 %v126, %v125
  %v139 = vpack.c.b16 %v128, %v127
  %v140 = vpack.c.b16 %v130, %v129
  %v141 = vpack.c.b16 %v132, %v131
  %v142 = vpack.c.b16 %v134, %v133
  %151 = vmatprep.subr.bf16.mxu0 0
  %152 = vmatpush1.bf16.msra.mxu0 %v135
  %153 = vmatprep.subr.bf16.mxu0 0
  %154 = vmatpush1.bf16.msra.mxu0 %v136
  %155 = vmatprep.subr.bf16.mxu0 0
  %156 = vmatpush1.bf16.msra.mxu0 %v137
  %157 = vmatprep.subr.bf16.mxu0 0
  %158 = vmatpush1.bf16.msra.mxu0 %v138
  %159 = vmatprep.subr.bf16.mxu0 0
  %160 = vmatpush1.bf16.msra.mxu0 %v139
  %161 = vmatprep.subr.bf16.mxu0 0
  %162 = vmatpush1.bf16.msra.mxu0 %v140
  %163 = vmatprep.subr.bf16.mxu0 0
  %164 = vmatpush1.bf16.msra.mxu0 %v141
  %165 = vmatprep.subr.bf16.mxu0 0
  %166 = vmatpush1.bf16.msra.mxu0 %v142
  %167 = vmatprep.subr.bf16.mxu0 0
  %168 = vmatpush1.bf16.msra.mxu0 0
  %169 = vmatprep.subr.bf16.mxu0 0
  %170 = vmatpush1.bf16.msra.mxu0 0
  %171 = vmatprep.subr.bf16.mxu0 0
  %172 = vmatpush1.bf16.msra.mxu0 0
  %173 = vmatprep.subr.bf16.mxu0 0
  %174 = vmatpush1.bf16.msra.mxu0 0
  %175 = vmatprep.subr.bf16.mxu0 0
  %176 = vmatpush1.bf16.msra.mxu0 0
  %177 = vmatprep.subr.bf16.mxu0 0
  %178 = vmatpush1.bf16.msra.mxu0 0
  %179 = vmatprep.subr.bf16.mxu0 0
  %180 = vmatpush1.bf16.msra.mxu0 0
  %181 = vmatprep.subr.bf16.mxu0 0
  %182 = vmatpush1.bf16.msra.mxu0 0
  %183 = vmatprep.mubr.bf16.mxu0 0
  %184 = vmatmul.mubr.bf16.gmra.mrb[0].mxu0 %v95
  %v185 = vpop.f32.mrb[0].mxu0
  %v186 = vadd.f32 0.0, %v185
  %v187 = vpop.f32.mrb[0].mxu0
  %v188 = vpop.f32.mrb[0].mxu0
  %v189 = vadd.f32 0.0, %v188
  %v190 = vpop.f32.mrb[0].mxu0
  %191 = vmatprep.mubr.bf16.mxu0 0
  %192 = vmatmul.mubr.bf16.gmra.mrb[0].mxu0 %v96
  %v193 = vpop.f32.mrb[0].mxu0
  %v194 = vadd.f32 0.0, %v193
  %v195 = vpop.f32.mrb[0].mxu0
  %v196 = vpop.f32.mrb[0].mxu0
  %v197 = vadd.f32 0.0, %v196
  %v198 = vpop.f32.mrb[0].mxu0
  %199 = vmatprep.mubr.bf16.mxu0 0
  %200 = vmatmul.mubr.bf16.gmra.mrb[0].mxu0 %v97
  %v201 = vpop.f32.mrb[0].mxu0
  %v202 = vadd.f32 0.0, %v201
  %v203 = vpop.f32.mrb[0].mxu0
  %v204 = vpop.f32.mrb[0].mxu0
  %v205 = vadd.f32 0.0, %v204
  %v206 = vpop.f32.mrb[0].mxu0
  %207 = vmatprep.mubr.bf16.mxu0 0
  %208 = vmatmul.mubr.bf16.gmra.mrb[0].mxu0 %v98
  %v209 = vpop.f32.mrb[0].mxu0
  %v210 = vadd.f32 0.0, %v209
  %v211 = vpop.f32.mrb[0].mxu0
  %v212 = vpop.f32.mrb[0].mxu0
  %v213 = vadd.f32 0.0, %v212
  %v214 = vpop.f32.mrb[0].mxu0
  %215 = vmatprep.mubr.bf16.mxu0 0
  %216 = vmatmul.mubr.bf16.gmra.mrb[0].mxu0 %v99
  %v217 = vpop.f32.mrb[0].mxu0
  %v218 = vadd.f32 0.0, %v217
  %v219 = vpop.f32.mrb[0].mxu0
  %v220 = vpop.f32.mrb[0].mxu0
  %v221 = vadd.f32 0.0, %v220
  %v222 = vpop.f32.mrb[0].mxu0
  %223 = vmatprep.mubr.bf16.mxu0 0
  %224 = vmatmul.mubr.bf16.gmra.mrb[0].mxu0 %v100
  %v225 = vpop.f32.mrb[0].mxu0
  %v226 = vadd.f32 0.0, %v225
  %v227 = vpop.f32.mrb[0].mxu0
  %v228 = vpop.f32.mrb[0].mxu0
  %v229 = vadd.f32 0.0, %v228
  %v230 = vpop.f32.mrb[0].mxu0
  %231 = vmatprep.mubr.bf16.mxu0 0
  %232 = vmatmul.mubr.bf16.gmra.mrb[0].mxu0 %v101
  %v233 = vpop.f32.mrb[0].mxu0
  %v234 = vadd.f32 0.0, %v233
  %v235 = vpop.f32.mrb[0].mxu0
  %v236 = vpop.f32.mrb[0].mxu0
  %v237 = vadd.f32 0.0, %v236
  %v238 = vpop.f32.mrb[0].mxu0
  %239 = vmatprep.mubr.bf16.mxu0 0
  %240 = vmatmul.mubr.bf16.gmra.mrb[0].mxu0 %v102
  %v241 = vpop.f32.mrb[0].mxu0
  %v242 = vadd.f32 0.0, %v241
  %v243 = vpop.f32.mrb[0].mxu0
  %v244 = vpop.f32.mrb[0].mxu0
  %v245 = vadd.f32 0.0, %v244
  %v246 = vpop.f32.mrb[0].mxu0
  %247 = vdwg.mxu0
  %v248 = vadd.f32 %v75, %v186
  %v249 = vadd.f32 %v76, %v189
  %v250 = vadd.f32 %v77, %v194
  %v251 = vadd.f32 %v78, %v197
  %v252 = vadd.f32 %v79, %v202
  %v253 = vadd.f32 %v80, %v205
  %v254 = vadd.f32 %v81, %v210
  %v255 = vadd.f32 %v82, %v213
  %v256 = vadd.f32 %v83, %v218
  %v257 = vadd.f32 %v84, %v221
  %v258 = vadd.f32 %v85, %v226
  %v259 = vadd.f32 %v86, %v229
  %v260 = vadd.f32 %v87, %v234
  %v261 = vadd.f32 %v88, %v237
  %v262 = vadd.f32 %v89, %v242
  %v263 = vadd.f32 %v90, %v245
  %264 = vst [vmem:[#allocation2] sm:$0xff] %v248
  %265 = vst [vmem:[#allocation2 + $0x8] sm:$0xff] %v249
  %266 = vst [vmem:[#allocation2 + $0x10] sm:$0xff] %v250
  %267 = vst [vmem:[#allocation2 + $0x18] sm:$0xff] %v251
  %268 = vst [vmem:[#allocation2 + $0x20] sm:$0xff] %v252
  %269 = vst [vmem:[#allocation2 + $0x28] sm:$0xff] %v253
  %270 = vst [vmem:[#allocation2 + $0x30] sm:$0xff] %v254
  %271 = vst [vmem:[#allocation2 + $0x38] sm:$0xff] %v255
  %272 = vst [vmem:[#allocation2 + $0x40] sm:$0xff] %v256
  %273 = vst [vmem:[#allocation2 + $0x48] sm:$0xff] %v257
  %274 = vst [vmem:[#allocation2 + $0x50] sm:$0xff] %v258
  %275 = vst [vmem:[#allocation2 + $0x58] sm:$0xff] %v259
  %276 = vst [vmem:[#allocation2 + $0x60] sm:$0xff] %v260
  %277 = vst [vmem:[#allocation2 + $0x68] sm:$0xff] %v261
  %278 = vst [vmem:[#allocation2 + $0x70] sm:$0xff] %v262
  %279 = vst [vmem:[#allocation2 + $0x78] sm:$0xff] %v263
  // Predicated region
  $region38: #{_gcnffn_padded.4} parent=0 // pred_check
    %p280 = pneg %p34
  $region39: #{_gcnffn_padded.4} parent=0 // pred_check_branch
    %282 = sbr.rel (%p280) target = $region41
  $region40: #{_gcnffn_padded.4} parent=0 // pred_region
    %v283 = vld [vmem:[%s4] sm:$0xff]
    %v284 = vld [vmem:[%s4 + $0x8] sm:$0xff]
    %v285 = vld [vmem:[%s4 + $0x10] sm:$0xff]
    %v286 = vld [vmem:[%s4 + $0x18] sm:$0xff]
    %v287 = vld [vmem:[%s4 + $0x20] sm:$0xff]
    %v288 = vld [vmem:[%s4 + $0x28] sm:$0xff]
    %v289 = vld [vmem:[%s4 + $0x30] sm:$0xff]
    %v290 = vld [vmem:[%s4 + $0x38] sm:$0xff]
    %v291 = vld [vmem:[%s4 + $0x40] sm:$0xff]
    %v292 = vld [vmem:[%s4 + $0x48] sm:$0xff]
    %v293 = vld [vmem:[%s4 + $0x50] sm:$0xff]
    %v294 = vld [vmem:[%s4 + $0x58] sm:$0xff]
    %v295 = vld [vmem:[%s4 + $0x60] sm:$0xff]
    %v296 = vld [vmem:[%s4 + $0x68] sm:$0xff]
    %v297 = vld [vmem:[%s4 + $0x70] sm:$0xff]
    %v298 = vld [vmem:[%s4 + $0x78] sm:$0xff]
    %v299 = vld [vmem:[#allocation2] sm:$0xff]
    %v300 = vld [vmem:[#allocation2 + $0x8] sm:$0xff]
    %v301 = vld [vmem:[#allocation2 + $0x10] sm:$0xff]
    %v302 = vld [vmem:[#allocation2 + $0x18] sm:$0xff]
    %v303 = vld [vmem:[#allocation2 + $0x20] sm:$0xff]
    %v304 = vld [vmem:[#allocation2 + $0x28] sm:$0xff]
    %v305 = vld [vmem:[#allocation2 + $0x30] sm:$0xff]
    %v306 = vld [vmem:[#allocation2 + $0x38] sm:$0xff]
    %v307 = vld [vmem:[#allocation2 + $0x40] sm:$0xff]
    %v308 = vld [vmem:[#allocation2 + $0x48] sm:$0xff]
    %v309 = vld [vmem:[#allocation2 + $0x50] sm:$0xff]
    %v310 = vld [vmem:[#allocation2 + $0x58] sm:$0xff]
    %v311 = vld [vmem:[#allocation2 + $0x60] sm:$0xff]
    %v312 = vld [vmem:[#allocation2 + $0x68] sm:$0xff]
    %v313 = vld [vmem:[#allocation2 + $0x70] sm:$0xff]
    %v314 = vld [vmem:[#allocation2 + $0x78] sm:$0xff]
    %316 = vset.pattern.permute.xlu0 0
    %317 = vperm.xlu0 %316, %v283
    %v318 = vpop.permute.xlu0 %317
    %321 = vset.pattern.permute.xlu0 0
    %322 = vperm.xlu0 %321, %v284
    %v323 = vpop.permute.xlu0 %322
    %326 = vset.pattern.permute.xlu0 0
    %327 = vperm.xlu0 %326, %v285
    %v328 = vpop.permute.xlu0 %327
    %331 = vset.pattern.permute.xlu0 0
    %332 = vperm.xlu0 %331, %v286
    %v333 = vpop.permute.xlu0 %332
    %336 = vset.pattern.permute.xlu0 0
    %337 = vperm.xlu0 %336, %v287
    %v338 = vpop.permute.xlu0 %337
    %341 = vset.pattern.permute.xlu0 0
    %342 = vperm.xlu0 %341, %v288
    %v343 = vpop.permute.xlu0 %342
    %346 = vset.pattern.permute.xlu0 0
    %347 = vperm.xlu0 %346, %v289
    %v348 = vpop.permute.xlu0 %347
    %351 = vset.pattern.permute.xlu0 0
    %352 = vperm.xlu0 %351, %v290
    %v353 = vpop.permute.xlu0 %352
    %356 = vset.pattern.permute.xlu0 0
    %357 = vperm.xlu0 %356, %v291
    %v358 = vpop.permute.xlu0 %357
    %361 = vset.pattern.permute.xlu0 0
    %362 = vperm.xlu0 %361, %v292
    %v363 = vpop.permute.xlu0 %362
    %366 = vset.pattern.permute.xlu0 0
    %367 = vperm.xlu0 %366, %v293
    %v368 = vpop.permute.xlu0 %367
    %371 = vset.pattern.permute.xlu0 0
    %372 = vperm.xlu0 %371, %v294
    %v373 = vpop.permute.xlu0 %372
    %376 = vset.pattern.permute.xlu0 0
    %377 = vperm.xlu0 %376, %v295
    %v378 = vpop.permute.xlu0 %377
    %381 = vset.pattern.permute.xlu0 0
    %382 = vperm.xlu0 %381, %v296
    %v383 = vpop.permute.xlu0 %382
    %386 = vset.pattern.permute.xlu0 0
    %387 = vperm.xlu0 %386, %v297
    %v388 = vpop.permute.xlu0 %387
    %391 = vset.pattern.permute.xlu0 0
    %392 = vperm.xlu0 %391, %v298
    %v393 = vpop.permute.xlu0 %392
    %v395 = vmul.f32 %v299, %v318
    %v396 = vmul.f32 %v300, %v323
    %v397 = vmul.f32 %v301, %v328
    %v398 = vmul.f32 %v302, %v333
    %v399 = vmul.f32 %v303, %v338
    %v400 = vmul.f32 %v304, %v343
    %v401 = vmul.f32 %v305, %v348
    %v402 = vmul.f32 %v306, %v353
    %v403 = vmul.f32 %v307, %v358
    %v404 = vmul.f32 %v308, %v363
    %v405 = vmul.f32 %v309, %v368
    %v406 = vmul.f32 %v310, %v373
    %v407 = vmul.f32 %v311, %v378
    %v408 = vmul.f32 %v312, %v383
    %v409 = vmul.f32 %v313, %v388
    %v410 = vmul.f32 %v314, %v393
    %v411 = vld [vmem:[%s5] sm:$0xff]
    %v412 = vld [vmem:[%s5 + $0x8] sm:$0xff]
    %v413 = vld [vmem:[%s5 + $0x10] sm:$0xff]
    %v414 = vld [vmem:[%s5 + $0x18] sm:$0xff]
    %v415 = vld [vmem:[%s5 + $0x20] sm:$0xff]
    %v416 = vld [vmem:[%s5 + $0x28] sm:$0xff]
    %v417 = vld [vmem:[%s5 + $0x30] sm:$0xff]
    %v418 = vld [vmem:[%s5 + $0x38] sm:$0xff]
    %v419 = vld [vmem:[%s5 + $0x40] sm:$0xff]
    %v420 = vld [vmem:[%s5 + $0x48] sm:$0xff]
    %v421 = vld [vmem:[%s5 + $0x50] sm:$0xff]
    %v422 = vld [vmem:[%s5 + $0x58] sm:$0xff]
    %v423 = vld [vmem:[%s5 + $0x60] sm:$0xff]
    %v424 = vld [vmem:[%s5 + $0x68] sm:$0xff]
    %v425 = vld [vmem:[%s5 + $0x70] sm:$0xff]
    %v426 = vld [vmem:[%s5 + $0x78] sm:$0xff]
    %v427 = vld [vmem:[%s6] sm:$0x1]
    %v429 = vlaneseq
    %v430 = vshrl.u32 %v429, 7
    %v431 = vsub.s32 0, %v430
    %v432 = vrot.slane %v427, %v431
    %434 = vmatprep.subr.mxu0 0.0
    %435 = vmatpush1.msra.mxu0 %v411
    %436 = vmatprep.subr.mxu0 0.0
    %437 = vmatpush1.msra.mxu0 %v412
    %438 = vmatprep.subr.mxu0 0.0
    %439 = vmatpush1.msra.mxu0 %v413
    %440 = vmatprep.subr.mxu0 0.0
    %441 = vmatpush1.msra.mxu0 %v414
    %442 = vmatprep.subr.mxu0 0.0
    %443 = vmatpush1.msra.mxu0 %v415
    %444 = vmatprep.subr.mxu0 0.0
    %445 = vmatpush1.msra.mxu0 %v416
    %446 = vmatprep.subr.mxu0 0.0
    %447 = vmatpush1.msra.mxu0 %v417
    %448 = vmatprep.subr.mxu0 0.0
    %449 = vmatpush1.msra.mxu0 %v418
    %450 = vmatprep.subr.mxu0 0.0
    %451 = vmatpush1.msra.mxu0 %v419
    %452 = vmatprep.subr.mxu0 0.0
    %453 = vmatpush1.msra.mxu0 %v420
    %454 = vmatprep.subr.mxu0 0.0
    %455 = vmatpush1.msra.mxu0 %v421
    %456 = vmatprep.subr.mxu0 0.0
    %457 = vmatpush1.msra.mxu0 %v422
    %458 = vmatprep.subr.mxu0 0.0
    %459 = vmatpush1.msra.mxu0 %v423
    %460 = vmatprep.subr.mxu0 0.0
    %461 = vmatpush1.msra.mxu0 %v424
    %462 = vmatprep.subr.mxu0 0.0
    %463 = vmatpush1.msra.mxu0 %v425
    %464 = vmatprep.subr.mxu0 0.0
    %465 = vmatpush1.msra.mxu0 %v426
    %466 = vmatprep.subr.mxu0 0.0
    %467 = vmatpush1.msra.mxu0 0.0
    %468 = vmatprep.subr.mxu0 0.0
    %469 = vmatpush1.msra.mxu0 0.0
    %470 = vmatprep.subr.mxu0 0.0
    %471 = vmatpush1.msra.mxu0 0.0
    %472 = vmatprep.subr.mxu0 0.0
    %473 = vmatpush1.msra.mxu0 0.0
    %474 = vmatprep.subr.mxu0 0.0
    %475 = vmatpush1.msra.mxu0 0.0
    %476 = vmatprep.subr.mxu0 0.0
    %477 = vmatpush1.msra.mxu0 0.0
    %478 = vmatprep.subr.mxu0 0.0
    %479 = vmatpush1.msra.mxu0 0.0
    %480 = vmatprep.subr.mxu0 0.0
    %481 = vmatpush1.msra.mxu0 0.0
    %482 = vmatprep.subr.mxu0 0.0
    %483 = vmatpush1.msra.mxu0 0.0
    %484 = vmatprep.subr.mxu0 0.0
    %485 = vmatpush1.msra.mxu0 0.0
    %486 = vmatprep.subr.mxu0 0.0
    %487 = vmatpush1.msra.mxu0 0.0
    %488 = vmatprep.subr.mxu0 0.0
    %489 = vmatpush1.msra.mxu0 0.0
    %490 = vmatprep.subr.mxu0 0.0
    %491 = vmatpush1.msra.mxu0 0.0
    %492 = vmatprep.subr.mxu0 0.0
    %493 = vmatpush1.msra.mxu0 0.0
    %494 = vmatprep.subr.mxu0 0.0
    %495 = vmatpush1.msra.mxu0 0.0
    %496 = vmatprep.subr.mxu0 0.0
    %497 = vmatpush1.msra.mxu0 0.0
    %498 = vmatprep.mubr.f32.mxu0 0.0
    %499 = vmatmul.mubr.f32.gmra.mrb[0].mxu0 %v395
    %v500 = vpop.f32.mrb[0].mxu0
    %v501 = vadd.f32 %v432, %v500
    %v502 = vpop.f32.mrb[0].mxu0
    %503 = vmatprep.mubr.f32.mxu0 0.0
    %504 = vmatmul.mubr.f32.gmra.mrb[0].mxu0 %v396
    %v505 = vpop.f32.mrb[0].mxu0
    %v506 = vadd.f32 %v432, %v505
    %v507 = vpop.f32.mrb[0].mxu0
    %508 = vmatprep.mubr.f32.mxu0 0.0
    %509 = vmatmul.mubr.f32.gmra.mrb[0].mxu0 %v397
    %v510 = vpop.f32.mrb[0].mxu0
    %v511 = vadd.f32 %v432, %v510
    %v512 = vpop.f32.mrb[0].mxu0
    %513 = vmatprep.mubr.f32.mxu0 0.0
    %514 = vmatmul.mubr.f32.gmra.mrb[0].mxu0 %v398
    %v515 = vpop.f32.mrb[0].mxu0
    %v516 = vadd.f32 %v432, %v515
    %v517 = vpop.f32.mrb[0].mxu0
    %518 = vmatprep.mubr.f32.mxu0 0.0
    %519 = vmatmul.mubr.f32.gmra.mrb[0].mxu0 %v399
    %v520 = vpop.f32.mrb[0].mxu0
    %v521 = vadd.f32 %v432, %v520
    %v522 = vpop.f32.mrb[0].mxu0
    %523 = vmatprep.mubr.f32.mxu0 0.0
    %524 = vmatmul.mubr.f32.gmra.mrb[0].mxu0 %v400
    %v525 = vpop.f32.mrb[0].mxu0
    %v526 = vadd.f32 %v432, %v525
    %v527 = vpop.f32.mrb[0].mxu0
    %528 = vmatprep.mubr.f32.mxu0 0.0
    %529 = vmatmul.mubr.f32.gmra.mrb[0].mxu0 %v401
    %v530 = vpop.f32.mrb[0].mxu0
    %v531 = vadd.f32 %v432, %v530
    %v532 = vpop.f32.mrb[0].mxu0
    %533 = vmatprep.mubr.f32.mxu0 0.0
    %534 = vmatmul.mubr.f32.gmra.mrb[0].mxu0 %v402
    %v535 = vpop.f32.mrb[0].mxu0
    %v536 = vadd.f32 %v432, %v535
    %v537 = vpop.f32.mrb[0].mxu0
    %538 = vmatprep.mubr.f32.mxu0 0.0
    %539 = vmatmul.mubr.f32.gmra.mrb[0].mxu0 %v403
    %v540 = vpop.f32.mrb[0].mxu0
    %v541 = vadd.f32 %v432, %v540
    %v542 = vpop.f32.mrb[0].mxu0
    %543 = vmatprep.mubr.f32.mxu0 0.0
    %544 = vmatmul.mubr.f32.gmra.mrb[0].mxu0 %v404
    %v545 = vpop.f32.mrb[0].mxu0
    %v546 = vadd.f32 %v432, %v545
    %v547 = vpop.f32.mrb[0].mxu0
    %548 = vmatprep.mubr.f32.mxu0 0.0
    %549 = vmatmul.mubr.f32.gmra.mrb[0].mxu0 %v405
    %v550 = vpop.f32.mrb[0].mxu0
    %v551 = vadd.f32 %v432, %v550
    %v552 = vpop.f32.mrb[0].mxu0
    %553 = vmatprep.mubr.f32.mxu0 0.0
    %554 = vmatmul.mubr.f32.gmra.mrb[0].mxu0 %v406
    %v555 = vpop.f32.mrb[0].mxu0
    %v556 = vadd.f32 %v432, %v555
    %v557 = vpop.f32.mrb[0].mxu0
    %558 = vmatprep.mubr.f32.mxu0 0.0
    %559 = vmatmul.mubr.f32.gmra.mrb[0].mxu0 %v407
    %v560 = vpop.f32.mrb[0].mxu0
    %v561 = vadd.f32 %v432, %v560
    %v562 = vpop.f32.mrb[0].mxu0
    %563 = vmatprep.mubr.f32.mxu0 0.0
    %564 = vmatmul.mubr.f32.gmra.mrb[0].mxu0 %v408
    %v565 = vpop.f32.mrb[0].mxu0
    %v566 = vadd.f32 %v432, %v565
    %v567 = vpop.f32.mrb[0].mxu0
    %568 = vmatprep.mubr.f32.mxu0 0.0
    %569 = vmatmul.mubr.f32.gmra.mrb[0].mxu0 %v409
    %v570 = vpop.f32.mrb[0].mxu0
    %v571 = vadd.f32 %v432, %v570
    %v572 = vpop.f32.mrb[0].mxu0
    %573 = vmatprep.mubr.f32.mxu0 0.0
    %574 = vmatmul.mubr.f32.gmra.mrb[0].mxu0 %v410
    %v575 = vpop.f32.mrb[0].mxu0
    %v576 = vadd.f32 %v432, %v575
    %v577 = vpop.f32.mrb[0].mxu0
    %578 = vdwg.mxu0
    %v579 = vmul.f32 %v501, %v501
    %v580 = vmul.f32 %v506, %v506
    %v581 = vmul.f32 %v511, %v511
    %v582 = vmul.f32 %v516, %v516
    %v583 = vmul.f32 %v521, %v521
    %v584 = vmul.f32 %v526, %v526
    %v585 = vmul.f32 %v531, %v531
    %v586 = vmul.f32 %v536, %v536
    %v587 = vmul.f32 %v541, %v541
    %v588 = vmul.f32 %v546, %v546
    %v589 = vmul.f32 %v551, %v551
    %v590 = vmul.f32 %v556, %v556
    %v591 = vmul.f32 %v561, %v561
    %v592 = vmul.f32 %v566, %v566
    %v593 = vmul.f32 %v571, %v571
    %v594 = vmul.f32 %v576, %v576
    %595 = vadd.xlane.f32.xlu0 %v579
    %v596 = vpop.xlane.xlu0 %595
    %597 = vadd.xlane.f32.xlu0 %v580
    %v598 = vpop.xlane.xlu0 %597
    %599 = vadd.xlane.f32.xlu0 %v581
    %v600 = vpop.xlane.xlu0 %599
    %601 = vadd.xlane.f32.xlu0 %v582
    %v602 = vpop.xlane.xlu0 %601
    %603 = vadd.xlane.f32.xlu0 %v583
    %v604 = vpop.xlane.xlu0 %603
    %605 = vadd.xlane.f32.xlu0 %v584
    %v606 = vpop.xlane.xlu0 %605
    %607 = vadd.xlane.f32.xlu0 %v585
    %v608 = vpop.xlane.xlu0 %607
    %609 = vadd.xlane.f32.xlu0 %v586
    %v610 = vpop.xlane.xlu0 %609
    %611 = vadd.xlane.f32.xlu0 %v587
    %v612 = vpop.xlane.xlu0 %611
    %613 = vadd.xlane.f32.xlu0 %v588
    %v614 = vpop.xlane.xlu0 %613
    %615 = vadd.xlane.f32.xlu0 %v589
    %v616 = vpop.xlane.xlu0 %615
    %617 = vadd.xlane.f32.xlu0 %v590
    %v618 = vpop.xlane.xlu0 %617
    %619 = vadd.xlane.f32.xlu0 %v591
    %v620 = vpop.xlane.xlu0 %619
    %621 = vadd.xlane.f32.xlu0 %v592
    %v622 = vpop.xlane.xlu0 %621
    %623 = vadd.xlane.f32.xlu0 %v593
    %v624 = vpop.xlane.xlu0 %623
    %625 = vadd.xlane.f32.xlu0 %v594
    %v626 = vpop.xlane.xlu0 %625
    %v627 = vmax.f32 %v596, 1e-24
    %v628 = vmax.f32 %v598, 1e-24
    %v629 = vmax.f32 %v600, 1e-24
    %v630 = vmax.f32 %v602, 1e-24
    %v631 = vmax.f32 %v604, 1e-24
    %v632 = vmax.f32 %v606, 1e-24
    %v633 = vmax.f32 %v608, 1e-24
    %v634 = vmax.f32 %v610, 1e-24
    %v635 = vmax.f32 %v612, 1e-24
    %v636 = vmax.f32 %v614, 1e-24
    %v637 = vmax.f32 %v616, 1e-24
    %v638 = vmax.f32 %v618, 1e-24
    %v639 = vmax.f32 %v620, 1e-24
    %v640 = vmax.f32 %v622, 1e-24
    %v641 = vmax.f32 %v624, 1e-24
    %v642 = vmax.f32 %v626, 1e-24
    %v643 = vrsqrt.pop %v627
    %v644 = vrsqrt.pop %v628
    %v645 = vrsqrt.pop %v629
    %v646 = vrsqrt.pop %v630
    %v647 = vrsqrt.pop %v631
    %v648 = vrsqrt.pop %v632
    %v649 = vrsqrt.pop %v633
    %v650 = vrsqrt.pop %v634
    %v651 = vrsqrt.pop %v635
    %v652 = vrsqrt.pop %v636
    %v653 = vrsqrt.pop %v637
    %v654 = vrsqrt.pop %v638
    %v655 = vrsqrt.pop %v639
    %v656 = vrsqrt.pop %v640
    %v657 = vrsqrt.pop %v641
    %v658 = vrsqrt.pop %v642
    %v659 = vmul.f32 %v501, %v643
    %v660 = vmul.f32 %v506, %v644
    %v661 = vmul.f32 %v511, %v645
    %v662 = vmul.f32 %v516, %v646
    %v663 = vmul.f32 %v521, %v647
    %v664 = vmul.f32 %v526, %v648
    %v665 = vmul.f32 %v531, %v649
    %v666 = vmul.f32 %v536, %v650
    %v667 = vmul.f32 %v541, %v651
    %v668 = vmul.f32 %v546, %v652
    %v669 = vmul.f32 %v551, %v653
    %v670 = vmul.f32 %v556, %v654
    %v671 = vmul.f32 %v561, %v655
    %v672 = vmul.f32 %v566, %v656
    %v673 = vmul.f32 %v571, %v657
    %v674 = vmul.f32 %v576, %v658
    %v675 = vld [vmem:[%s2] sm:$0xf]
    %v676 = vld [vmem:[%s2 + $0x4] sm:$0xf]
    %v677 = vld [vmem:[%s2 + $0x8] sm:$0xf]
    %v678 = vld [vmem:[%s2 + $0xc] sm:$0xf]
    %v679 = vld [vmem:[%s2 + $0x10] sm:$0xf]
    %v680 = vld [vmem:[%s2 + $0x14] sm:$0xf]
    %v681 = vld [vmem:[%s2 + $0x18] sm:$0xf]
    %v682 = vld [vmem:[%s2 + $0x1c] sm:$0xf]
    %v683 = vld [vmem:[%s2 + $0x20] sm:$0xf]
    %v684 = vld [vmem:[%s2 + $0x24] sm:$0xf]
    %v685 = vld [vmem:[%s2 + $0x28] sm:$0xf]
    %v686 = vld [vmem:[%s2 + $0x2c] sm:$0xf]
    %v687 = vld [vmem:[%s2 + $0x30] sm:$0xf]
    %v688 = vld [vmem:[%s2 + $0x34] sm:$0xf]
    %v689 = vld [vmem:[%s2 + $0x38] sm:$0xf]
    %v690 = vld [vmem:[%s2 + $0x3c] sm:$0xf]
    %v691 = vunpack.c.l.bf16 %v675
    %v692 = vunpack.c.l.bf16 %v676
    %v693 = vunpack.c.l.bf16 %v677
    %v694 = vunpack.c.l.bf16 %v678
    %v695 = vunpack.c.l.bf16 %v679
    %v696 = vunpack.c.l.bf16 %v680
    %v697 = vunpack.c.l.bf16 %v681
    %v698 = vunpack.c.l.bf16 %v682
    %v699 = vunpack.c.l.bf16 %v683
    %v700 = vunpack.c.l.bf16 %v684
    %v701 = vunpack.c.l.bf16 %v685
    %v702 = vunpack.c.l.bf16 %v686
    %v703 = vunpack.c.l.bf16 %v687
    %v704 = vunpack.c.l.bf16 %v688
    %v705 = vunpack.c.l.bf16 %v689
    %v706 = vunpack.c.l.bf16 %v690
    %v707 = vmul.f32 %v691, %v691
    %v708 = vmul.f32 %v692, %v692
    %v709 = vmul.f32 %v693, %v693
    %v710 = vmul.f32 %v694, %v694
    %v711 = vmul.f32 %v695, %v695
    %v712 = vmul.f32 %v696, %v696
    %v713 = vmul.f32 %v697, %v697
    %v714 = vmul.f32 %v698, %v698
    %v715 = vmul.f32 %v699, %v699
    %v716 = vmul.f32 %v700, %v700
    %v717 = vmul.f32 %v701, %v701
    %v718 = vmul.f32 %v702, %v702
    %v719 = vmul.f32 %v703, %v703
    %v720 = vmul.f32 %v704, %v704
    %v721 = vmul.f32 %v705, %v705
    %v722 = vmul.f32 %v706, %v706
    %723 = vadd.xlane.f32.xlu0 %v707
    %v724 = vpop.xlane.xlu0 %723
    %725 = vadd.xlane.f32.xlu0 %v708
    %v726 = vpop.xlane.xlu0 %725
    %727 = vadd.xlane.f32.xlu0 %v709
    %v728 = vpop.xlane.xlu0 %727
    %729 = vadd.xlane.f32.xlu0 %v710
    %v730 = vpop.xlane.xlu0 %729
    %731 = vadd.xlane.f32.xlu0 %v711
    %v732 = vpop.xlane.xlu0 %731
    %733 = vadd.xlane.f32.xlu0 %v712
    %v734 = vpop.xlane.xlu0 %733
    %735 = vadd.xlane.f32.xlu0 %v713
    %v736 = vpop.xlane.xlu0 %735
    %737 = vadd.xlane.f32.xlu0 %v714
    %v738 = vpop.xlane.xlu0 %737
    %739 = vadd.xlane.f32.xlu0 %v715
    %v740 = vpop.xlane.xlu0 %739
    %741 = vadd.xlane.f32.xlu0 %v716
    %v742 = vpop.xlane.xlu0 %741
    %743 = vadd.xlane.f32.xlu0 %v717
    %v744 = vpop.xlane.xlu0 %743
    %745 = vadd.xlane.f32.xlu0 %v718
    %v746 = vpop.xlane.xlu0 %745
    %747 = vadd.xlane.f32.xlu0 %v719
    %v748 = vpop.xlane.xlu0 %747
    %749 = vadd.xlane.f32.xlu0 %v720
    %v750 = vpop.xlane.xlu0 %749
    %751 = vadd.xlane.f32.xlu0 %v721
    %v752 = vpop.xlane.xlu0 %751
    %753 = vadd.xlane.f32.xlu0 %v722
    %v754 = vpop.xlane.xlu0 %753
    %v755 = vrsqrt.pop %v724
    %v756 = vmul.f32 %v724, %v755
    %vm757 = vcmp.eq.f32.partialorder %v724, inf
    %v758 = vsel %vm757, %v724, %v756
    %vm759 = vcmp.eq.f32.partialorder %v724, 0.0
    %v760 = vand.u32 %v724, 2147483648
    %v761 = vsel %vm759, %v760, %v758
    %v762 = vrsqrt.pop %v726
    %v763 = vmul.f32 %v726, %v762
    %vm764 = vcmp.eq.f32.partialorder %v726, inf
    %v765 = vsel %vm764, %v726, %v763
    %vm766 = vcmp.eq.f32.partialorder %v726, 0.0
    %v767 = vand.u32 %v726, 2147483648
    %v768 = vsel %vm766, %v767, %v765
    %v769 = vrsqrt.pop %v728
    %v770 = vmul.f32 %v728, %v769
    %vm771 = vcmp.eq.f32.partialorder %v728, inf
    %v772 = vsel %vm771, %v728, %v770
    %vm773 = vcmp.eq.f32.partialorder %v728, 0.0
    %v774 = vand.u32 %v728, 2147483648
    %v775 = vsel %vm773, %v774, %v772
    %v776 = vrsqrt.pop %v730
    %v777 = vmul.f32 %v730, %v776
    %vm778 = vcmp.eq.f32.partialorder %v730, inf
    %v779 = vsel %vm778, %v730, %v777
    %vm780 = vcmp.eq.f32.partialorder %v730, 0.0
    %v781 = vand.u32 %v730, 2147483648
    %v782 = vsel %vm780, %v781, %v779
    %v783 = vrsqrt.pop %v732
    %v784 = vmul.f32 %v732, %v783
    %vm785 = vcmp.eq.f32.partialorder %v732, inf
    %v786 = vsel %vm785, %v732, %v784
    %vm787 = vcmp.eq.f32.partialorder %v732, 0.0
    %v788 = vand.u32 %v732, 2147483648
    %v789 = vsel %vm787, %v788, %v786
    %v790 = vrsqrt.pop %v734
    %v791 = vmul.f32 %v734, %v790
    %vm792 = vcmp.eq.f32.partialorder %v734, inf
    %v793 = vsel %vm792, %v734, %v791
    %vm794 = vcmp.eq.f32.partialorder %v734, 0.0
    %v795 = vand.u32 %v734, 2147483648
    %v796 = vsel %vm794, %v795, %v793
    %v797 = vrsqrt.pop %v736
    %v798 = vmul.f32 %v736, %v797
    %vm799 = vcmp.eq.f32.partialorder %v736, inf
    %v800 = vsel %vm799, %v736, %v798
    %vm801 = vcmp.eq.f32.partialorder %v736, 0.0
    %v802 = vand.u32 %v736, 2147483648
    %v803 = vsel %vm801, %v802, %v800
    %v804 = vrsqrt.pop %v738
    %v805 = vmul.f32 %v738, %v804
    %vm806 = vcmp.eq.f32.partialorder %v738, inf
    %v807 = vsel %vm806, %v738, %v805
    %vm808 = vcmp.eq.f32.partialorder %v738, 0.0
    %v809 = vand.u32 %v738, 2147483648
    %v810 = vsel %vm808, %v809, %v807
    %v811 = vrsqrt.pop %v740
    %v812 = vmul.f32 %v740, %v811
    %vm813 = vcmp.eq.f32.partialorder %v740, inf
    %v814 = vsel %vm813, %v740, %v812
    %vm815 = vcmp.eq.f32.partialorder %v740, 0.0
    %v816 = vand.u32 %v740, 2147483648
    %v817 = vsel %vm815, %v816, %v814
    %v818 = vrsqrt.pop %v742
    %v819 = vmul.f32 %v742, %v818
    %vm820 = vcmp.eq.f32.partialorder %v742, inf
    %v821 = vsel %vm820, %v742, %v819
    %vm822 = vcmp.eq.f32.partialorder %v742, 0.0
    %v823 = vand.u32 %v742, 2147483648
    %v824 = vsel %vm822, %v823, %v821
    %v825 = vrsqrt.pop %v744
    %v826 = vmul.f32 %v744, %v825
    %vm827 = vcmp.eq.f32.partialorder %v744, inf
    %v828 = vsel %vm827, %v744, %v826
    %vm829 = vcmp.eq.f32.partialorder %v744, 0.0
    %v830 = vand.u32 %v744, 2147483648
    %v831 = vsel %vm829, %v830, %v828
    %v832 = vrsqrt.pop %v746
    %v833 = vmul.f32 %v746, %v832
    %vm834 = vcmp.eq.f32.partialorder %v746, inf
    %v835 = vsel %vm834, %v746, %v833
    %vm836 = vcmp.eq.f32.partialorder %v746, 0.0
    %v837 = vand.u32 %v746, 2147483648
    %v838 = vsel %vm836, %v837, %v835
    %v839 = vrsqrt.pop %v748
    %v840 = vmul.f32 %v748, %v839
    %vm841 = vcmp.eq.f32.partialorder %v748, inf
    %v842 = vsel %vm841, %v748, %v840
    %vm843 = vcmp.eq.f32.partialorder %v748, 0.0
    %v844 = vand.u32 %v748, 2147483648
    %v845 = vsel %vm843, %v844, %v842
    %v846 = vrsqrt.pop %v750
    %v847 = vmul.f32 %v750, %v846
    %vm848 = vcmp.eq.f32.partialorder %v750, inf
    %v849 = vsel %vm848, %v750, %v847
    %vm850 = vcmp.eq.f32.partialorder %v750, 0.0
    %v851 = vand.u32 %v750, 2147483648
    %v852 = vsel %vm850, %v851, %v849
    %v853 = vrsqrt.pop %v752
    %v854 = vmul.f32 %v752, %v853
    %vm855 = vcmp.eq.f32.partialorder %v752, inf
    %v856 = vsel %vm855, %v752, %v854
    %vm857 = vcmp.eq.f32.partialorder %v752, 0.0
    %v858 = vand.u32 %v752, 2147483648
    %v859 = vsel %vm857, %v858, %v856
    %v860 = vrsqrt.pop %v754
    %v861 = vmul.f32 %v754, %v860
    %vm862 = vcmp.eq.f32.partialorder %v754, inf
    %v863 = vsel %vm862, %v754, %v861
    %vm864 = vcmp.eq.f32.partialorder %v754, 0.0
    %v865 = vand.u32 %v754, 2147483648
    %v866 = vsel %vm864, %v865, %v863
    %v867 = vmul.f32 %v659, %v761
    %v868 = vmul.f32 %v660, %v768
    %v869 = vmul.f32 %v661, %v775
    %v870 = vmul.f32 %v662, %v782
    %v871 = vmul.f32 %v663, %v789
    %v872 = vmul.f32 %v664, %v796
    %v873 = vmul.f32 %v665, %v803
    %v874 = vmul.f32 %v666, %v810
    %v875 = vmul.f32 %v667, %v817
    %v876 = vmul.f32 %v668, %v824
    %v877 = vmul.f32 %v669, %v831
    %v878 = vmul.f32 %v670, %v838
    %v879 = vmul.f32 %v671, %v845
    %v880 = vmul.f32 %v672, %v852
    %v881 = vmul.f32 %v673, %v859
    %v882 = vmul.f32 %v674, %v866
    %s883 = sld [smem:[#allocation3]]
    %v884 = vstv %s883
    %v885 = vmul.f32 %v867, %v884
    %v886 = vmul.f32 %v868, %v884
    %v887 = vmul.f32 %v869, %v884
    %v888 = vmul.f32 %v870, %v884
    %v889 = vmul.f32 %v871, %v884
    %v890 = vmul.f32 %v872, %v884
    %v891 = vmul.f32 %v873, %v884
    %v892 = vmul.f32 %v874, %v884
    %v893 = vmul.f32 %v875, %v884
    %v894 = vmul.f32 %v876, %v884
    %v895 = vmul.f32 %v877, %v884
    %v896 = vmul.f32 %v878, %v884
    %v897 = vmul.f32 %v879, %v884
    %v898 = vmul.f32 %v880, %v884
    %v899 = vmul.f32 %v881, %v884
    %v900 = vmul.f32 %v882, %v884
    %v901 = vmul.f32 %v885, 0.5
    %v902 = vmul.f32 %v886, 0.5
    %v903 = vmul.f32 %v887, 0.5
    %v904 = vmul.f32 %v888, 0.5
    %v905 = vmul.f32 %v889, 0.5
    %v906 = vmul.f32 %v890, 0.5
    %v907 = vmul.f32 %v891, 0.5
    %v908 = vmul.f32 %v892, 0.5
    %v909 = vmul.f32 %v893, 0.5
    %v910 = vmul.f32 %v894, 0.5
    %v911 = vmul.f32 %v895, 0.5
    %v912 = vmul.f32 %v896, 0.5
    %v913 = vmul.f32 %v897, 0.5
    %v914 = vmul.f32 %v898, 0.5
    %v915 = vmul.f32 %v899, 0.5
    %v916 = vmul.f32 %v900, 0.5
    %v917 = vmul.f32 %v885, 0.70710677
    %v918 = vmul.f32 %v886, 0.70710677
    %v919 = vmul.f32 %v887, 0.70710677
    %v920 = vmul.f32 %v888, 0.70710677
    %v921 = vmul.f32 %v889, 0.70710677
    %v922 = vmul.f32 %v890, 0.70710677
    %v923 = vmul.f32 %v891, 0.70710677
    %v924 = vmul.f32 %v892, 0.70710677
    %v925 = vmul.f32 %v893, 0.70710677
    %v926 = vmul.f32 %v894, 0.70710677
    %v927 = vmul.f32 %v895, 0.70710677
    %v928 = vmul.f32 %v896, 0.70710677
    %v929 = vmul.f32 %v897, 0.70710677
    %v930 = vmul.f32 %v898, 0.70710677
    %v931 = vmul.f32 %v899, 0.70710677
    %v932 = vmul.f32 %v900, 0.70710677
    %v933 = verf.f32.pop %v917
    %v934 = verf.f32.pop %v918
    %v935 = verf.f32.pop %v919
    %v936 = verf.f32.pop %v920
    %v937 = verf.f32.pop %v921
    %v938 = verf.f32.pop %v922
    %v939 = verf.f32.pop %v923
    %v940 = verf.f32.pop %v924
    %v941 = verf.f32.pop %v925
    %v942 = verf.f32.pop %v926
    %v943 = verf.f32.pop %v927
    %v944 = verf.f32.pop %v928
    %v945 = verf.f32.pop %v929
    %v946 = verf.f32.pop %v930
    %v947 = verf.f32.pop %v931
    %v948 = verf.f32.pop %v932
    %v949 = vadd.f32 %v933, 1.0
    %v950 = vadd.f32 %v934, 1.0
    %v951 = vadd.f32 %v935, 1.0
    %v952 = vadd.f32 %v936, 1.0
    %v953 = vadd.f32 %v937, 1.0
    %v954 = vadd.f32 %v938, 1.0
    %v955 = vadd.f32 %v939, 1.0
    %v956 = vadd.f32 %v940, 1.0
    %v957 = vadd.f32 %v941, 1.0
    %v958 = vadd.f32 %v942, 1.0
    %v959 = vadd.f32 %v943, 1.0
    %v960 = vadd.f32 %v944, 1.0
    %v961 = vadd.f32 %v945, 1.0
    %v962 = vadd.f32 %v946, 1.0
    %v963 = vadd.f32 %v947, 1.0
    %v964 = vadd.f32 %v948, 1.0
    %v965 = vmul.f32 %v901, %v949
    %v966 = vmul.f32 %v902, %v950
    %v967 = vmul.f32 %v903, %v951
    %v968 = vmul.f32 %v904, %v952
    %v969 = vmul.f32 %v905, %v953
    %v970 = vmul.f32 %v906, %v954
    %v971 = vmul.f32 %v907, %v955
    %v972 = vmul.f32 %v908, %v956
    %v973 = vmul.f32 %v909, %v957
    %v974 = vmul.f32 %v910, %v958
    %v975 = vmul.f32 %v911, %v959
    %v976 = vmul.f32 %v912, %v960
    %v977 = vmul.f32 %v913, %v961
    %v978 = vmul.f32 %v914, %v962
    %v979 = vmul.f32 %v915, %v963
    %v980 = vmul.f32 %v916, %v964
    %v981 = vld [vmem:[%s3] sm:$0xff]
    %v982 = vld [vmem:[%s3 + $0x8] sm:$0xff]
    %v983 = vld [vmem:[%s3 + $0x10] sm:$0xff]
    %v984 = vld [vmem:[%s3 + $0x18] sm:$0xff]
    %v985 = vld [vmem:[%s3 + $0x20] sm:$0xff]
    %v986 = vld [vmem:[%s3 + $0x28] sm:$0xff]
    %v987 = vld [vmem:[%s3 + $0x30] sm:$0xff]
    %v988 = vld [vmem:[%s3 + $0x38] sm:$0xff]
    %v989 = vld [vmem:[%s3 + $0x40] sm:$0xff]
    %v990 = vld [vmem:[%s3 + $0x48] sm:$0xff]
    %v991 = vld [vmem:[%s3 + $0x50] sm:$0xff]
    %v992 = vld [vmem:[%s3 + $0x58] sm:$0xff]
    %v993 = vld [vmem:[%s3 + $0x60] sm:$0xff]
    %v994 = vld [vmem:[%s3 + $0x68] sm:$0xff]
    %v995 = vld [vmem:[%s3 + $0x70] sm:$0xff]
    %v996 = vld [vmem:[%s3 + $0x78] sm:$0xff]
    %v997 = vadd.f32 %v965, %v981
    %v998 = vadd.f32 %v966, %v982
    %v999 = vadd.f32 %v967, %v983
    %v1000 = vadd.f32 %v968, %v984
    %v1001 = vadd.f32 %v969, %v985
    %v1002 = vadd.f32 %v970, %v986
    %v1003 = vadd.f32 %v971, %v987
    %v1004 = vadd.f32 %v972, %v988
    %v1005 = vadd.f32 %v973, %v989
    %v1006 = vadd.f32 %v974, %v990
    %v1007 = vadd.f32 %v975, %v991
    %v1008 = vadd.f32 %v976, %v992
    %v1009 = vadd.f32 %v977, %v993
    %v1010 = vadd.f32 %v978, %v994
    %v1011 = vadd.f32 %v979, %v995
    %v1012 = vadd.f32 %v980, %v996
    %1013 = vst [vmem:[%s8] sm:$0xff] %v997
    %1014 = vst [vmem:[%s8 + $0x8] sm:$0xff] %v998
    %1015 = vst [vmem:[%s8 + $0x10] sm:$0xff] %v999
    %1016 = vst [vmem:[%s8 + $0x18] sm:$0xff] %v1000
    %1017 = vst [vmem:[%s8 + $0x20] sm:$0xff] %v1001
    %1018 = vst [vmem:[%s8 + $0x28] sm:$0xff] %v1002
    %1019 = vst [vmem:[%s8 + $0x30] sm:$0xff] %v1003
    %1020 = vst [vmem:[%s8 + $0x38] sm:$0xff] %v1004
    %1021 = vst [vmem:[%s8 + $0x40] sm:$0xff] %v1005
    %1022 = vst [vmem:[%s8 + $0x48] sm:$0xff] %v1006
    %1023 = vst [vmem:[%s8 + $0x50] sm:$0xff] %v1007
    %1024 = vst [vmem:[%s8 + $0x58] sm:$0xff] %v1008
    %1025 = vst [vmem:[%s8 + $0x60] sm:$0xff] %v1009
    %1026 = vst [vmem:[%s8 + $0x68] sm:$0xff] %v1010
    %1027 = vst [vmem:[%s8 + $0x70] sm:$0xff] %v1011
    %1028 = vst [vmem:[%s8 + $0x78] sm:$0xff] %v1012
    %v1029 = vadd.f32 %v997, %v998
    %v1030 = vadd.f32 %v1029, %v999
    %v1031 = vadd.f32 %v1030, %v1000
    %v1032 = vadd.f32 %v1031, %v1001
    %v1033 = vadd.f32 %v1032, %v1002
    %v1034 = vadd.f32 %v1033, %v1003
    %v1035 = vadd.f32 %v1034, %v1004
    %v1036 = vadd.f32 %v1035, %v1005
    %v1037 = vadd.f32 %v1036, %v1006
    %v1038 = vadd.f32 %v1037, %v1007
    %v1039 = vadd.f32 %v1038, %v1008
    %v1040 = vadd.f32 %v1039, %v1009
    %v1041 = vadd.f32 %v1040, %v1010
    %v1042 = vadd.f32 %v1041, %v1011
    %v1043 = vadd.f32 %v1042, %v1012
    %v1044 = vrot.slane %v1043, 4
    %v1045 = vadd.f32 %v1043, %v1044
    %v1046 = vrot.slane %v1045, 2
    %v1047 = vadd.f32 %v1045, %v1046
    %v1048 = vrot.slane %v1047, 1
    %v1049 = vadd.f32 %v1047, %v1048
    %v1050 = vmul.f32 %v997, %v997
    %v1051 = vmul.f32 %v998, %v998
    %v1052 = vmul.f32 %v999, %v999
    %v1053 = vmul.f32 %v1000, %v1000
    %v1054 = vmul.f32 %v1001, %v1001
    %v1055 = vmul.f32 %v1002, %v1002
    %v1056 = vmul.f32 %v1003, %v1003
    %v1057 = vmul.f32 %v1004, %v1004
    %v1058 = vmul.f32 %v1005, %v1005
    %v1059 = vmul.f32 %v1006, %v1006
    %v1060 = vmul.f32 %v1007, %v1007
    %v1061 = vmul.f32 %v1008, %v1008
    %v1062 = vmul.f32 %v1009, %v1009
    %v1063 = vmul.f32 %v1010, %v1010
    %v1064 = vmul.f32 %v1011, %v1011
    %v1065 = vmul.f32 %v1012, %v1012
    %v1066 = vadd.f32 %v1050, %v1051
    %v1067 = vadd.f32 %v1066, %v1052
    %v1068 = vadd.f32 %v1067, %v1053
    %v1069 = vadd.f32 %v1068, %v1054
    %v1070 = vadd.f32 %v1069, %v1055
    %v1071 = vadd.f32 %v1070, %v1056
    %v1072 = vadd.f32 %v1071, %v1057
    %v1073 = vadd.f32 %v1072, %v1058
    %v1074 = vadd.f32 %v1073, %v1059
    %v1075 = vadd.f32 %v1074, %v1060
    %v1076 = vadd.f32 %v1075, %v1061
    %v1077 = vadd.f32 %v1076, %v1062
    %v1078 = vadd.f32 %v1077, %v1063
    %v1079 = vadd.f32 %v1078, %v1064
    %v1080 = vadd.f32 %v1079, %v1065
    %v1081 = vrot.slane %v1080, 4
    %v1082 = vadd.f32 %v1080, %v1081
    %v1083 = vrot.slane %v1082, 2
    %v1084 = vadd.f32 %v1082, %v1083
    %v1085 = vrot.slane %v1084, 1
    %v1086 = vadd.f32 %v1084, %v1085
    %v1087 = vlaneseq
    %v1088 = vshrl.u32 %v1087, 7
    %vm1089 = vcmp.eq.s32.totalorder %v1088, 0
    %v1090 = vsel %vm1089, %v1049, 0.0
    %1091 = vst [vmem:[%s9] sm:$0xff] %v1090
    %v1092 = vsel %vm1089, %v1086, 0.0
    %1093 = vst [vmem:[%s10] sm:$0xff] %v1092
  $region41: #{_gcnffn_padded.4} parent=0 // pred_fallthru
    _
  // Predicated region
  $region42: #{_gcnffn_padded.4} parent=0 // pred_check
    _
  $region43: #{_gcnffn_padded.4} parent=0 // pred_check_branch
    %1095 = sbr.rel (0) target = $region45
  $region44: #{_gcnffn_padded.4} parent=0 // pred_region
    _
  $region45: #{_gcnffn_padded.4} parent=0 // pred_fallthru
    _
  // Predicated region
  $region46: #{_gcnffn_padded.4} parent=0 // pred_check
    _
  $region47: #{_gcnffn_padded.4} parent=0 // pred_check_branch
    %1097 = sbr.rel (0) target = $region49
  $region48: #{_gcnffn_padded.4} parent=0 // pred_region
    _
  $region49: #{_gcnffn_padded.4} parent=0 // pred_fallthru
    _
  // Predicated region
  $region50: #{_gcnffn_padded.4} parent=0 // pred_check
    _
  $region51: #{_gcnffn_padded.4} parent=0 // pred_check_branch
    %1099 = sbr.rel (0) target = $region53
  $region52: #{_gcnffn_padded.4} parent=0 // pred_region
    _
  $region53: #{_gcnffn_padded.4} parent=0 // pred_fallthru
    _
  // Predicated region
  $region54: #{_gcnffn_padded.4} parent=0 // pred_check
    _
  $region55: #{_gcnffn_padded.4} parent=0 // pred_check_branch
    %1101 = sbr.rel (0) target = $region57
  $region56: #{_gcnffn_padded.4} parent=0 // pred_region
    _
  $region57: #{_gcnffn_padded.4} parent=0 // pred_fallthru
    _
  // Predicated region
  $region58: #{_gcnffn_padded.4} parent=0 // pred_check
    _
  $region59: #{_gcnffn_padded.4} parent=0 // pred_check_branch
    %1103 = sbr.rel (0) target = $region61
  $region60: #{_gcnffn_padded.4} parent=0 // pred_region
    _
  $region61: #{_gcnffn_padded.4} parent=0 // pred_fallthru
    _
  // Predicated region
  $region62: #{_gcnffn_padded.4} parent=0 // pred_check
    _
  $region63: #{_gcnffn_padded.4} parent=0 // pred_check_branch
    %1105 = sbr.rel (0) target = $region65
  $region64: #{_gcnffn_padded.4} parent=0 // pred_region
    _
  $region65: #{_gcnffn_padded.4} parent=0 // pred_fallthru
    _

</llo_original>
